<compile_context>
chip_gen: v6e
topology: v6e:2x2x1
jax: 0.10.0
libtpu: 0.0.40
codegen_flags: <defaults>
</compile_context>

<pallas_src>
import numpy as np
import jax
import jax.numpy as jnp
from jax.experimental import pallas as pl
from jax.experimental.pallas import tpu as pltpu


def _bilinear_matrix(in_size, out_size):
    """Interpolation matrix A (out_size, in_size), bilinear, align_corners=True."""
    if out_size == 1:
        A = np.zeros((1, in_size), np.float32)
        A[0, 0] = 1.0
        return A
    src = np.arange(out_size, dtype=np.float64) * (in_size - 1) / (out_size - 1)
    i0 = np.clip(np.floor(src).astype(np.int64), 0, in_size - 1)
    i1 = np.clip(i0 + 1, 0, in_size - 1)
    frac = (src - i0).astype(np.float32)
    rows = np.arange(out_size)
    A = np.zeros((out_size, in_size), np.float32)
    A[rows, i0] += (1.0 - frac)
    A[rows, i1] += frac
    return A


def _pick_row_block(h_out, w_out, c_total, c4, itemsize,
                    budget_bytes=8 * 1024 * 1024):
    """Largest output row block (mult. of 8, lane extent mult. of 128 when blocked)
    whose double-buffered s4 + output tiles stay under `budget_bytes`."""
    def tile_bytes(hb):
        # output tile + two s4 input tiles, x2 for the pipeline's double buffering
        return 2 * (c_total + 2 * c4) * hb * w_out * itemsize

    candidates = [h_out]                                # full extent is always legal
    for hb in range(8, h_out, 8):
        if h_out % hb == 0 and (hb * w_out) % 128 == 0:
            candidates.append(hb)
    fitting = [hb for hb in candidates if tile_bytes(hb) <= budget_bytes]
    if fitting:
        return max(fitting)                             # biggest tile that fits
    return min(candidates, key=tile_bytes)              # best effort


def _fusion_kernel(x1_s16_ref, x2_s16_ref, x1_s8_ref, x2_s8_ref,
                   x1_s4_ref, x2_s4_ref,
                   ah16_ref, aw16t_ref, ah8_ref, aw8t_ref,
                   out_ref):
    c16 = x1_s16_ref.shape[1]
    c8 = x1_s8_ref.shape[1]
    c4 = x1_s4_ref.shape[1]

    def upsample_rows(s, ah_blk, aw_t):
        # s: (c, h, w) summed low-res features
        # ah_blk: (hb, h) height-interp rows for this output row block
        # aw_t:   (w, W) transposed width-interp matrix
        c, h, w = s.shape
        hb = ah_blk.shape[0]
        W = aw_t.shape[1]
        # width pass: single 2-D MXU matmul, M = c*h, K = w, N = W (lane-dense).
        t = jnp.dot(s.reshape(c * h, w), aw_t,
                    preferred_element_type=jnp.float32).reshape(c, h, W)
        # height pass: contract h directly (batched over c) -- no swapaxes/relayout.
        ah_b = jnp.broadcast_to(ah_blk[None].astype(jnp.float32), (c, hb, h))
        up = jax.lax.dot_general(ah_b, t, (((2,), (1,)), ((0,), (0,))),
                                 preferred_element_type=jnp.float32)  # (c, hb, W)
        # fold (hb, W) into the lane dim so the store below is lane-dense.
        return up.reshape(c, hb * W)

    # s16 path: add + x4 bilinear upsample, written straight into its channel slab.
    up16 = upsample_rows(x1_s16_ref[0] + x2_s16_ref[0],
                         ah16_ref[...], aw16t_ref[...])
    out_ref[0, 0:c16, :] = up16.astype(out_ref.dtype)

    # s8 path: add + x2 bilinear upsample.
    up8 = upsample_rows(x1_s8_ref[0] + x2_s8_ref[0],
                        ah8_ref[...], aw8t_ref[...])
    out_ref[0, c16:c16 + c8, :] = up8.astype(out_ref.dtype)

    # s4 path: pure lane-dense add straight into its channel slab.
    out_ref[0, c16 + c8:c16 + c8 + c4, :] = (
        x1_s4_ref[0] + x2_s4_ref[0]).astype(out_ref.dtype)


def summation_fusion(x1_s16, x2_s16, x1_s8, x2_s8, x1_s4, x2_s4, *, row_block=None):
    n, c16, h16, w16 = x1_s16.shape
    _, c8, h8, w8 = x1_s8.shape
    _, c4, H, W = x1_s4.shape
    assert (h16 * 4, w16 * 4) == (H, W) and (h8 * 2, w8 * 2) == (H, W)
    c_total = c16 + c8 + c4
    out_dtype = jnp.result_type(x1_s16.dtype, x1_s8.dtype, x1_s4.dtype)
    itemsize = jnp.dtype(out_dtype).itemsize

    # Output row block (spatial tiling of the full-resolution arrays).
    if row_block is None:
        hb = _pick_row_block(H, W, c_total, c4, itemsize)
    else:
        hb = int(row_block)
    assert H % hb == 0, "row_block must divide the output height"
    assert hb == H or (hb % 8 == 0 and (hb * W) % 128 == 0), \
        "row_block must be a multiple of 8 with row_block*W % 128 == 0 (or == H)"
    sblk = hb * W
    g = H // hb

    # Interpolation matrices (bf16 operands when the data is bf16; f32 accumulate).
    mat_dtype = (jnp.bfloat16 if jnp.dtype(out_dtype) == jnp.dtype(jnp.bfloat16)
                 else jnp.float32)
    ah16_np = _bilinear_matrix(h16, H)          # (H, h16)   row-blocked per grid step
    aw16_np = _bilinear_matrix(w16, W).T        # (w16, W)   full
    ah8_np = _bilinear_matrix(h8, H)            # (H, h8)
    aw8_np = _bilinear_matrix(w8, W).T          # (w8, W)
    ah16 = jnp.asarray(ah16_np, mat_dtype)
    aw16_t = jnp.asarray(aw16_np, mat_dtype)
    ah8 = jnp.asarray(ah8_np, mat_dtype)
    aw8_t = jnp.asarray(aw8_np, mat_dtype)

    # Lane-dense flattened views of the s4 path and the output (free reshapes).
    x1_s4f = x1_s4.reshape(n, c4, H * W)
    x2_s4f = x2_s4.reshape(n, c4, H * W)

    in_specs = [
        # s16 / s8 pairs: full low-res feature maps, fetched once per batch item
        # (index_map constant in the row-block axis -> no refetch across g).
        pl.BlockSpec((1, c16, h16, w16), lambda i, j: (i, 0, 0, 0)),
        pl.BlockSpec((1, c16, h16, w16), lambda i, j: (i, 0, 0, 0)),
        pl.BlockSpec((1, c8, h8, w8), lambda i, j: (i, 0, 0, 0)),
        pl.BlockSpec((1, c8, h8, w8), lambda i, j: (i, 0, 0, 0)),
        # s4 pair: lane-dense spatial blocks of the flattened layout.
        pl.BlockSpec((1, c4, sblk), lambda i, j: (i, 0, j)),
        pl.BlockSpec((1, c4, sblk), lambda i, j: (i, 0, j)),
        # height interp matrices: rows for this output row block only.
        pl.BlockSpec((hb, h16), lambda i, j: (j, 0)),
        pl.BlockSpec((w16, W), lambda i, j: (0, 0)),
        pl.BlockSpec((hb, h8), lambda i, j: (j, 0)),
        pl.BlockSpec((w8, W), lambda i, j: (0, 0)),
    ]
    out_specs = pl.BlockSpec((1, c_total, sblk), lambda i, j: (i, 0, j))

    def _nbytes(shape, dtype):
        return int(np.prod(shape)) * jnp.dtype(dtype).itemsize

    flops = int(
        2 * n * (c16 * h16 * w16 * W + c16 * H * h16 * W
                 + c8 * h8 * w8 * W + c8 * H * h8 * W)
        + n * (c16 * h16 * w16 + c8 * h8 * w8 + c4 * H * W))
    bytes_accessed = int(
        2 * _nbytes((n, c16, h16, w16), x1_s16.dtype)
        + 2 * _nbytes((n, c8, h8, w8), x1_s8.dtype)
        + 2 * _nbytes((n, c4, H, W), x1_s4.dtype)
        + _nbytes((n, c_total, H, W), out_dtype)
        + _nbytes(ah16_np.shape, mat_dtype) + _nbytes(aw16_np.shape, mat_dtype)
        + _nbytes(ah8_np.shape, mat_dtype) + _nbytes(aw8_np.shape, mat_dtype))

    out_flat = pl.pallas_call(
        _fusion_kernel,
        out_shape=jax.ShapeDtypeStruct((n, c_total, H * W), out_dtype),
        grid_spec=pltpu.PrefetchScalarGridSpec(
            num_scalar_prefetch=0,
            grid=(n, g),
            in_specs=in_specs,
            out_specs=out_specs,
        ),
        compiler_params=pltpu.CompilerParams(
            # fully data-parallel over (batch, output-row-block): megacore on v7x.
            dimension_semantics=("parallel", "parallel"),
            # explicit budget well under v7x's 64 MiB physical VMEM.
            vmem_limit_bytes=48 * 1024 * 1024,
        ),
        cost_estimate=pl.CostEstimate(flops=flops, transcendentals=0,
                                      bytes_accessed=bytes_accessed),
    )(x1_s16, x2_s16, x1_s8, x2_s8, x1_s4f, x2_s4f,
      ah16, aw16_t, ah8, aw8_t)

    return out_flat.reshape(n, c_total, H, W)


def _reference(x1_s16, x2_s16, x1_s8, x2_s8, x1_s4, x2_s4):
    """Plain-JAX reference (same align_corners=True separable formulation)."""
    _, _, h16, w16 = x1_s16.shape
    _, _, h8, w8 = x1_s8.shape
    _, _, H, W = x1_s4.shape
    ah16 = jnp.asarray(_bilinear_matrix(h16, H))
    aw16 = jnp.asarray(_bilinear_matrix(w16, W))
    ah8 = jnp.asarray(_bilinear_matrix(h8, H))
    aw8 = jnp.asarray(_bilinear_matrix(w8, W))
    hi = jax.lax.Precision.HIGHEST
    u16 = jnp.einsum('oh,nchw,pw->ncop', ah16, x1_s16 + x2_s16, aw16, precision=hi)
    u8 = jnp.einsum('oh,nchw,pw->ncop', ah8, x1_s8 + x2_s8, aw8, precision=hi)
    return jnp.concatenate([u16, u8, x1_s4 + x2_s4], axis=1)


if __name__ == "__main__":
    key = jax.random.PRNGKey(0)
    ks = jax.random.split(key, 6)

    N = 2
    C16, C8, C4 = 4, 4, 4
    H4 = W4 = 16

    x1_s16 = jax.random.normal(ks[0], (N, C16, H4 // 4, W4 // 4), jnp.float32)
    x2_s16 = jax.random.normal(ks[1], (N, C16, H4 // 4, W4 // 4), jnp.float32)
    x1_s8 = jax.random.normal(ks[2], (N, C8, H4 // 2, W4 // 2), jnp.float32)
    x2_s8 = jax.random.normal(ks[3], (N, C8, H4 // 2, W4 // 2), jnp.float32)
    x1_s4 = jax.random.normal(ks[4], (N, C4, H4, W4), jnp.float32)
    x2_s4 = jax.random.normal(ks[5], (N, C4, H4, W4), jnp.float32)

    ref = _reference(x1_s16, x2_s16, x1_s8, x2_s8, x1_s4, x2_s4)

    # Blocked path: grid = (N, H4 // 8) = (2, 2), lane extent 8*16 = 128 per tile.
    out = summation_fusion(x1_s16, x2_s16, x1_s8, x2_s8, x1_s4, x2_s4, row_block=8)
    out = jax.block_until_ready(out)
    assert out.shape == (N, C16 + C8 + C4, H4, W4), out.shape
    assert jnp.allclose(out, ref, atol=1e-4, rtol=1e-4), "mismatch (row_block=8)"

    # Heuristic block-size path (single spatial block at these tiny shapes).
    out2 = jax.block_until_ready(
        summation_fusion(x1_s16, x2_s16, x1_s8, x2_s8, x1_s4, x2_s4))
    assert jnp.allclose(out2, ref, atol=1e-4, rtol=1e-4), "mismatch (auto block)"

    print("KERNEL_OK")
</pallas_src>

<mosaic_0001>
module attributes {stable_mosaic.version = 11 : i64} {
  func.func @_fusion_kernel(%arg0: i32, %arg1: i32, %arg2: memref<1x4x4x4xf32, #tpu.memory_space<vmem>>, %arg3: memref<1x4x4x4xf32, #tpu.memory_space<vmem>>, %arg4: memref<1x4x8x8xf32, #tpu.memory_space<vmem>>, %arg5: memref<1x4x8x8xf32, #tpu.memory_space<vmem>>, %arg6: memref<1x4x128xf32, #tpu.memory_space<vmem>>, %arg7: memref<1x4x128xf32, #tpu.memory_space<vmem>>, %arg8: memref<8x4xf32, #tpu.memory_space<vmem>>, %arg9: memref<4x16xf32, #tpu.memory_space<vmem>>, %arg10: memref<8x8xf32, #tpu.memory_space<vmem>>, %arg11: memref<8x16xf32, #tpu.memory_space<vmem>>, %arg12: memref<1x12x128xf32, #tpu.memory_space<vmem>>) attributes {dimension_semantics = [#tpu.dimension_semantics<parallel>, #tpu.dimension_semantics<parallel>], iteration_bounds = array<i64: 2, 2>, scalar_prefetch = 0 : i64, scratch_operands = 0 : i64, tpu.core_type = #tpu.core_type<tc>, window_params = [{transform_indices = @transform_0, window_bounds = array<i64: 1, 4, 4, 4>}, {transform_indices = @transform_1, window_bounds = array<i64: 1, 4, 4, 4>}, {transform_indices = @transform_2, window_bounds = array<i64: 1, 4, 8, 8>}, {transform_indices = @transform_3, window_bounds = array<i64: 1, 4, 8, 8>}, {transform_indices = @transform_4, window_bounds = array<i64: 1, 4, 128>}, {transform_indices = @transform_5, window_bounds = array<i64: 1, 4, 128>}, {transform_indices = @transform_6, window_bounds = array<i64: 8, 4>}, {pipeline_mode = #tpu.pipeline_mode<synchronous>, transform_indices = @transform_7, window_bounds = array<i64: 4, 16>}, {transform_indices = @transform_8, window_bounds = array<i64: 8, 8>}, {pipeline_mode = #tpu.pipeline_mode<synchronous>, transform_indices = @transform_9, window_bounds = array<i64: 8, 16>}, {transform_indices = @transform_10, window_bounds = array<i64: 1, 12, 128>}]} {
    %c0 = arith.constant 0 : index
    %c0_0 = arith.constant 0 : index
    %c0_1 = arith.constant 0 : index
    %c0_2 = arith.constant 0 : index
    %0 = vector.load %arg2[%c0, %c0_0, %c0_1, %c0_2] : memref<1x4x4x4xf32, #tpu.memory_space<vmem>>, vector<1x4x4x4xf32>
    %1 = vector.shape_cast %0 : vector<1x4x4x4xf32> to vector<4x4x4xf32>
    %c0_3 = arith.constant 0 : index
    %c0_4 = arith.constant 0 : index
    %c0_5 = arith.constant 0 : index
    %c0_6 = arith.constant 0 : index
    %2 = vector.load %arg3[%c0_3, %c0_4, %c0_5, %c0_6] : memref<1x4x4x4xf32, #tpu.memory_space<vmem>>, vector<1x4x4x4xf32>
    %3 = vector.shape_cast %2 : vector<1x4x4x4xf32> to vector<4x4x4xf32>
    %4 = arith.addf %1, %3 : vector<4x4x4xf32>
    %c0_7 = arith.constant 0 : index
    %c0_8 = arith.constant 0 : index
    %5 = vector.load %arg8[%c0_7, %c0_8] : memref<8x4xf32, #tpu.memory_space<vmem>>, vector<8x4xf32>
    %c0_9 = arith.constant 0 : index
    %c0_10 = arith.constant 0 : index
    %6 = vector.load %arg9[%c0_9, %c0_10] : memref<4x16xf32, #tpu.memory_space<vmem>>, vector<4x16xf32>
    %7 = vector.shape_cast %4 : vector<4x4x4xf32> to vector<16x4xf32>
    %cst = arith.constant dense<0.000000e+00> : vector<16x16xf32>
    %8 = tpu.matmul %7, %6, %cst {dimension_numbers = #tpu.dot_dimension_numbers<[1], [0], [0], [1], [0, 0, 1, 1], [], []>} : vector<16x4xf32>, vector<4x16xf32>, vector<16x16xf32> -> vector<16x16xf32>
    %9 = vector.shape_cast %8 : vector<16x16xf32> to vector<4x4x16xf32>
    %10 = vector.shape_cast %5 : vector<8x4xf32> to vector<1x8x4xf32>
    %11 = vector.shape_cast %10 : vector<1x8x4xf32> to vector<1x8x4xf32>
    %12 = vector.broadcast %11 : vector<1x8x4xf32> to vector<4x8x4xf32>
    %cst_11 = arith.constant dense<0.000000e+00> : vector<4x8x16xf32>
    %13 = tpu.matmul %12, %9, %cst_11 {dimension_numbers = #tpu.dot_dimension_numbers<[2], [1], [1], [2], [0, 0, 0, 1, 1, 2], [0], [0]>} : vector<4x8x4xf32>, vector<4x4x16xf32>, vector<4x8x16xf32> -> vector<4x8x16xf32>
    %14 = vector.shape_cast %13 : vector<4x8x16xf32> to vector<4x128xf32>
    %c0_12 = arith.constant 0 : index
    %c0_13 = arith.constant 0 : index
    %c0_14 = arith.constant 0 : index
    %15 = vector.load %arg12[%c0_12, %c0_13, %c0_14] : memref<1x12x128xf32, #tpu.memory_space<vmem>>, vector<1x4x128xf32>
    %16 = vector.shape_cast %15 : vector<1x4x128xf32> to vector<4x128xf32>
    %17 = vector.shape_cast %14 : vector<4x128xf32> to vector<1x4x128xf32>
    tpu.vector_store %arg12[%c0_12, %c0_13, %c0_14], %17 {strides = array<i32>} : memref<1x12x128xf32, #tpu.memory_space<vmem>>, vector<1x4x128xf32>,
    %c0_15 = arith.constant 0 : index
    %c0_16 = arith.constant 0 : index
    %c0_17 = arith.constant 0 : index
    %c0_18 = arith.constant 0 : index
    %18 = vector.load %arg4[%c0_15, %c0_16, %c0_17, %c0_18] : memref<1x4x8x8xf32, #tpu.memory_space<vmem>>, vector<1x4x8x8xf32>
    %19 = vector.shape_cast %18 : vector<1x4x8x8xf32> to vector<4x8x8xf32>
    %c0_19 = arith.constant 0 : index
    %c0_20 = arith.constant 0 : index
    %c0_21 = arith.constant 0 : index
    %c0_22 = arith.constant 0 : index
    %20 = vector.load %arg5[%c0_19, %c0_20, %c0_21, %c0_22] : memref<1x4x8x8xf32, #tpu.memory_space<vmem>>, vector<1x4x8x8xf32>
    %21 = vector.shape_cast %20 : vector<1x4x8x8xf32> to vector<4x8x8xf32>
    %22 = arith.addf %19, %21 : vector<4x8x8xf32>
    %c0_23 = arith.constant 0 : index
    %c0_24 = arith.constant 0 : index
    %23 = vector.load %arg10[%c0_23, %c0_24] : memref<8x8xf32, #tpu.memory_space<vmem>>, vector<8x8xf32>
    %c0_25 = arith.constant 0 : index
    %c0_26 = arith.constant 0 : index
    %24 = vector.load %arg11[%c0_25, %c0_26] : memref<8x16xf32, #tpu.memory_space<vmem>>, vector<8x16xf32>
    %25 = vector.shape_cast %22 : vector<4x8x8xf32> to vector<32x8xf32>
    %cst_27 = arith.constant dense<0.000000e+00> : vector<32x16xf32>
    %26 = tpu.matmul %25, %24, %cst_27 {dimension_numbers = #tpu.dot_dimension_numbers<[1], [0], [0], [1], [0, 0, 1, 1], [], []>} : vector<32x8xf32>, vector<8x16xf32>, vector<32x16xf32> -> vector<32x16xf32>
    %27 = vector.shape_cast %26 : vector<32x16xf32> to vector<4x8x16xf32>
    %28 = vector.shape_cast %23 : vector<8x8xf32> to vector<1x8x8xf32>
    %29 = vector.shape_cast %28 : vector<1x8x8xf32> to vector<1x8x8xf32>
    %30 = vector.broadcast %29 : vector<1x8x8xf32> to vector<4x8x8xf32>
    %cst_28 = arith.constant dense<0.000000e+00> : vector<4x8x16xf32>
    %31 = tpu.matmul %30, %27, %cst_28 {dimension_numbers = #tpu.dot_dimension_numbers<[2], [1], [1], [2], [0, 0, 0, 1, 1, 2], [0], [0]>} : vector<4x8x8xf32>, vector<4x8x16xf32>, vector<4x8x16xf32> -> vector<4x8x16xf32>
    %32 = vector.shape_cast %31 : vector<4x8x16xf32> to vector<4x128xf32>
    %c0_29 = arith.constant 0 : index
    %c4 = arith.constant 4 : index
    %c0_30 = arith.constant 0 : index
    %33 = vector.load %arg12[%c0_29, %c4, %c0_30] : memref<1x12x128xf32, #tpu.memory_space<vmem>>, vector<1x4x128xf32>
    %34 = vector.shape_cast %33 : vector<1x4x128xf32> to vector<4x128xf32>
    %35 = vector.shape_cast %32 : vector<4x128xf32> to vector<1x4x128xf32>
    tpu.vector_store %arg12[%c0_29, %c4, %c0_30], %35 {strides = array<i32>} : memref<1x12x128xf32, #tpu.memory_space<vmem>>, vector<1x4x128xf32>,
    %c0_31 = arith.constant 0 : index
    %c0_32 = arith.constant 0 : index
    %c0_33 = arith.constant 0 : index
    %36 = vector.load %arg6[%c0_31, %c0_32, %c0_33] : memref<1x4x128xf32, #tpu.memory_space<vmem>>, vector<1x4x128xf32>
    %37 = vector.shape_cast %36 : vector<1x4x128xf32> to vector<4x128xf32>
    %c0_34 = arith.constant 0 : index
    %c0_35 = arith.constant 0 : index
    %c0_36 = arith.constant 0 : index
    %38 = vector.load %arg7[%c0_34, %c0_35, %c0_36] : memref<1x4x128xf32, #tpu.memory_space<vmem>>, vector<1x4x128xf32>
    %39 = vector.shape_cast %38 : vector<1x4x128xf32> to vector<4x128xf32>
    %40 = arith.addf %37, %39 : vector<4x128xf32>
    %c0_37 = arith.constant 0 : index
    %c8 = arith.constant 8 : index
    %c0_38 = arith.constant 0 : index
    %41 = vector.load %arg12[%c0_37, %c8, %c0_38] : memref<1x12x128xf32, #tpu.memory_space<vmem>>, vector<1x4x128xf32>
    %42 = vector.shape_cast %41 : vector<1x4x128xf32> to vector<4x128xf32>
    %43 = vector.shape_cast %40 : vector<4x128xf32> to vector<1x4x128xf32>
    tpu.vector_store %arg12[%c0_37, %c8, %c0_38], %43 {strides = array<i32>} : memref<1x12x128xf32, #tpu.memory_space<vmem>>, vector<1x4x128xf32>,
    return
  }
  func.func @transform_0(%arg0: i32, %arg1: i32) -> (i32, i32, i32, i32) {
    %c0_i32 = arith.constant 0 : i32
    %c0_i32_0 = arith.constant 0 : i32
    %c0_i32_1 = arith.constant 0 : i32
    %c0_i32_2 = arith.constant 0 : i32
    return %arg0, %c0_i32, %c0_i32_0, %c0_i32_1 : i32, i32, i32, i32
  }
  func.func @transform_1(%arg0: i32, %arg1: i32) -> (i32, i32, i32, i32) {
    %c0_i32 = arith.constant 0 : i32
    %c0_i32_0 = arith.constant 0 : i32
    %c0_i32_1 = arith.constant 0 : i32
    %c0_i32_2 = arith.constant 0 : i32
    return %arg0, %c0_i32, %c0_i32_0, %c0_i32_1 : i32, i32, i32, i32
  }
  func.func @transform_2(%arg0: i32, %arg1: i32) -> (i32, i32, i32, i32) {
    %c0_i32 = arith.constant 0 : i32
    %c0_i32_0 = arith.constant 0 : i32
    %c0_i32_1 = arith.constant 0 : i32
    %c0_i32_2 = arith.constant 0 : i32
    return %arg0, %c0_i32, %c0_i32_0, %c0_i32_1 : i32, i32, i32, i32
  }
  func.func @transform_3(%arg0: i32, %arg1: i32) -> (i32, i32, i32, i32) {
    %c0_i32 = arith.constant 0 : i32
    %c0_i32_0 = arith.constant 0 : i32
    %c0_i32_1 = arith.constant 0 : i32
    %c0_i32_2 = arith.constant 0 : i32
    return %arg0, %c0_i32, %c0_i32_0, %c0_i32_1 : i32, i32, i32, i32
  }
  func.func @transform_4(%arg0: i32, %arg1: i32) -> (i32, i32, i32) {
    %c0_i32 = arith.constant 0 : i32
    %c0_i32_0 = arith.constant 0 : i32
    return %arg0, %c0_i32, %arg1 : i32, i32, i32
  }
  func.func @transform_5(%arg0: i32, %arg1: i32) -> (i32, i32, i32) {
    %c0_i32 = arith.constant 0 : i32
    %c0_i32_0 = arith.constant 0 : i32
    return %arg0, %c0_i32, %arg1 : i32, i32, i32
  }
  func.func @transform_6(%arg0: i32, %arg1: i32) -> (i32, i32) {
    %c0_i32 = arith.constant 0 : i32
    %c0_i32_0 = arith.constant 0 : i32
    return %arg1, %c0_i32 : i32, i32
  }
  func.func @transform_7(%arg0: i32, %arg1: i32) -> (i32, i32) {
    %c0_i32 = arith.constant 0 : i32
    %c0_i32_0 = arith.constant 0 : i32
    %c0_i32_1 = arith.constant 0 : i32
    return %c0_i32, %c0_i32_0 : i32, i32
  }
  func.func @transform_8(%arg0: i32, %arg1: i32) -> (i32, i32) {
    %c0_i32 = arith.constant 0 : i32
    %c0_i32_0 = arith.constant 0 : i32
    return %arg1, %c0_i32 : i32, i32
  }
  func.func @transform_9(%arg0: i32, %arg1: i32) -> (i32, i32) {
    %c0_i32 = arith.constant 0 : i32
    %c0_i32_0 = arith.constant 0 : i32
    %c0_i32_1 = arith.constant 0 : i32
    return %c0_i32, %c0_i32_0 : i32, i32
  }
  func.func @transform_10(%arg0: i32, %arg1: i32) -> (i32, i32, i32) {
    %c0_i32 = arith.constant 0 : i32
    %c0_i32_0 = arith.constant 0 : i32
    return %arg0, %c0_i32, %arg1 : i32, i32, i32
  }
}

</mosaic_0001>

<llo_original>
// kernel: tpu_custom_call.1
$region0: #{tpu_custom_call.1}
  #allocation0 [shape = 'u32[]', space=smem, size = 0x4, offset = 0x4, fixed_abs, tag = 'smem constant byte address 0x4 - core index']
  #allocation1 [shape = 'u32[144,128]{1,0:T(1,128)}', space=vmem, size = 0x12000, scoped, tag = 'internal scratch']
  %s0 = inlined_call_operand.vmem [shape: f32[2,4,4,4], index: 0, kind: input, shape index: {}]
  %s1 = inlined_call_operand.hbm [shape: f32[2,4,4,4], index: 1, kind: input, shape index: {}]
  %s2 = inlined_call_operand.hbm [shape: f32[2,4,8,8], index: 2, kind: input, shape index: {}]
  %s3 = inlined_call_operand.hbm [shape: f32[2,4,8,8], index: 3, kind: input, shape index: {}]
  %s4 = inlined_call_operand.vmem [shape: f32[2,4,256], index: 4, kind: input, shape index: {}]
  %s5 = inlined_call_operand.hbm [shape: f32[2,4,256], index: 5, kind: input, shape index: {}]
  %s6 = inlined_call_operand.vmem [shape: f32[16,4], index: 6, kind: input, shape index: {}]
  %s7 = inlined_call_operand.hbm [shape: f32[4,16], index: 7, kind: input, shape index: {}]
  %s8 = inlined_call_operand.vmem [shape: f32[16,8], index: 8, kind: input, shape index: {}]
  %s9 = inlined_call_operand.hbm [shape: f32[8,16], index: 9, kind: input, shape index: {}]
  %s10 = inlined_call_operand.vmem [shape: f32[2,12,256], index: 10, kind: output, shape index: {}]
  %s11 = sld [smem:[#allocation0]]
  $region131: #{tpu_custom_call.1} parent=0
    _
  %s13 = ssub.s32 1, %s11
  %s14 = scalar_select 0, %s13, %s11
  $region1: #{tpu_custom_call.1} parent=0
    #allocation2 [shape = 'u8[16384]{0}', space=vmem, size = 0x4000, scoped, tag = 'input window, operand 1']
    #allocation3 [shape = 's32[2]{0}', space=sflag, size = 0x8, scoped, tag = 'scoped memory for tpu_custom_call.1']
    #allocation4 [shape = 'u8[32768]{0}', space=vmem, size = 0x8000, scoped, tag = 'input window, operand 2']
    #allocation5 [shape = 's32[2]{0}', space=sflag, size = 0x8, scoped, tag = 'scoped memory for tpu_custom_call.1']
    #allocation6 [shape = 'u8[32768]{0}', space=vmem, size = 0x8000, scoped, tag = 'input window, operand 3']
    #allocation7 [shape = 'u8[4096]{0}', space=vmem, size = 0x1000, scoped, tag = 'input window, operand 5']
    #allocation8 [shape = 's32[2]{0}', space=sflag, size = 0x8, scoped, tag = 'scoped memory for tpu_custom_call.1']
    #allocation9 [shape = 'u8[2048]{0}', space=vmem, size = 0x800, scoped, tag = 'input window, operand 7, single buffered']
    #allocation10 [shape = 'u8[4096]{0}', space=vmem, size = 0x1000, scoped, tag = 'input window, operand 9, single buffered']
    #allocation11 [shape = 's32[1]{0}', space=sflag, size = 0x4, scoped, tag = 'scoped memory for tpu_custom_call.1']
    #allocation12 [shape = 'u8[16384]{0}', space=vmem, size = 0x4000, scoped, tag = 'output window, operand 0']
    %15 = vsyncpa [#allocation3], 0
    %s16 = scalar_lea.sflag [#allocation3], 1
    %17 = vsyncpa %s16, 0
    %18 = vsyncpa [#allocation5], 0
    %s19 = scalar_lea.sflag [#allocation5], 1
    %20 = vsyncpa %s19, 0
    %21 = vsyncpa [#allocation8], 0
    %s22 = scalar_lea.sflag [#allocation8], 1
    %23 = vsyncpa %s22, 0
    %24 = vsyncpa [#allocation11], 0
    loop: start=0, step=1, limit=6
    $region2: #{tpu_custom_call.1} parent=1 // loop_pre_header
      _
    $region3: #{tpu_custom_call.1} parent=1 // loop_header
      %s26 = sphi 0, %s30
      %p27 = scmp.ge.s32.totalorder %s26, 6
      %s33 = sphi 0, %s45
      %s34 = sphi 0, %s41
      %s35 = sphi 0, %s33
      %s36 = sphi 0, %s34
      %s37 = sphi 0, %s35
      %s38 = sphi 0, %s36
      %s48 = sphi 0, %s50
      %s51 = sphi 0, %s48
      %s52 = sphi 0, %s51
      %s68 = sphi 0, %s52
      %s74 = sphi 0, %s76
      %s77 = sphi 0, %s74
      %s78 = sphi 0, %s77
      %s94 = sphi 0, %s78
      %s100 = sphi 0, %s102
      %s103 = sphi 0, %s100
      %s104 = sphi 0, %s103
      %s120 = sphi 0, %s104
      %s126 = sphi 0, %s128
      %s129 = sphi 0, %s126
      %s130 = sphi 0, %s129
      %s146 = sphi 0, %s130
      %s154 = sphi 0, %s156
      %s157 = sphi 0, %s154
      %s158 = sphi 0, %s157
      %s174 = sphi 0, %s158
      %s182 = sphi 0, %s184
      %s185 = sphi 0, %s182
      %s186 = sphi 0, %s185
      %s202 = sphi 0, %s186
      %s208 = sphi 0, %s210
      %s211 = sphi 0, %s208
      %s212 = sphi 0, %s211
      %s228 = sphi 0, %s212
      %s232 = sphi 0, %s232
      %s234 = sphi 0, %s232
      %s235 = sphi 0, %s234
      %s249 = sphi 0, %s235
      %s255 = sphi 0, %s257
      %s258 = sphi 0, %s255
      %s259 = sphi 0, %s258
      %s275 = sphi 0, %s259
      %s279 = sphi 0, %s279
      %s281 = sphi 0, %s279
      %s282 = sphi 0, %s281
      %s296 = sphi 0, %s282
      %s304 = sphi 0, %s306
      %s307 = sphi 0, %s304
      %s308 = sphi 0, %s307
      %s324 = sphi 0, %s308
    $region4: #{tpu_custom_call.1} parent=1 // loop_header_branch
      %29 = sbr.rel (%p27) target = $region8
    $region5: #{tpu_custom_call.1} parent=1 // loop_body
      %s31 = ssub.s32 %s26, 1
      %s32 = ssub.s32 %s26, 2
      %s39 = sadd.s32 1, %s34
      %p40 = scmp.ge.s32.totalorder %s39, 2
      %s41 = scalar_select %p40, 0, %s39
      %s42 = sadd.s32 1, %s33
      %s43 = scalar_select %p40, %s42, %s33
      %p44 = scmp.ge.s32.totalorder %s43, 2
      %s45 = scalar_select %p44, 0, %s43
      %s46 = ssub.s32 %s33, %s45
      %p47 = scmp.eq.s32.totalorder %s46, 0
      %s49 = sadd.s32 %s48, 1
      %s50 = scalar_select %p47, %s48, %s49
      %p53 = pneg %p47
      %p54 = scmp.eq.s32.totalorder %s26, 3
      %p55 = por %p53, %p54
      %p56 = scmp.ne.s32.totalorder %s48, %s51
      %p57 = scmp.eq.s32.totalorder %s26, 0
      %p58 = por %p56, %p57
      %p59 = scmp.ne.s32.totalorder %s48, %s51
      %p60 = scmp.eq.s32.totalorder %s31, 3
      %p61 = por %p59, %p60
      %p62 = scmp.ne.s32.totalorder %s51, %s52
      %p63 = scmp.eq.s32.totalorder %s31, 0
      %p64 = por %p62, %p63
      %p65 = scmp.ne.s32.totalorder %s51, %s52
      %p66 = scmp.eq.s32.totalorder %s32, 3
      %p67 = por %p65, %p66
      %p69 = scmp.ne.s32.totalorder %s52, %s68
      %p70 = scmp.eq.s32.totalorder %s32, 0
      %p71 = por %p69, %p70
      %s72 = ssub.s32 %s33, %s45
      %p73 = scmp.eq.s32.totalorder %s72, 0
      %s75 = sadd.s32 %s74, 1
      %s76 = scalar_select %p73, %s74, %s75
      %p79 = pneg %p73
      %p80 = scmp.eq.s32.totalorder %s26, 3
      %p81 = por %p79, %p80
      %p82 = scmp.ne.s32.totalorder %s74, %s77
      %p83 = scmp.eq.s32.totalorder %s26, 0
      %p84 = por %p82, %p83
      %p85 = scmp.ne.s32.totalorder %s74, %s77
      %p86 = scmp.eq.s32.totalorder %s31, 3
      %p87 = por %p85, %p86
      %p88 = scmp.ne.s32.totalorder %s77, %s78
      %p89 = scmp.eq.s32.totalorder %s31, 0
      %p90 = por %p88, %p89
      %p91 = scmp.ne.s32.totalorder %s77, %s78
      %p92 = scmp.eq.s32.totalorder %s32, 3
      %p93 = por %p91, %p92
      %p95 = scmp.ne.s32.totalorder %s78, %s94
      %p96 = scmp.eq.s32.totalorder %s32, 0
      %p97 = por %p95, %p96
      %s98 = ssub.s32 %s33, %s45
      %p99 = scmp.eq.s32.totalorder %s98, 0
      %s101 = sadd.s32 %s100, 1
      %s102 = scalar_select %p99, %s100, %s101
      %p105 = pneg %p99
      %p106 = scmp.eq.s32.totalorder %s26, 3
      %p107 = por %p105, %p106
      %p108 = scmp.ne.s32.totalorder %s100, %s103
      %p109 = scmp.eq.s32.totalorder %s26, 0
      %p110 = por %p108, %p109
      %p111 = scmp.ne.s32.totalorder %s100, %s103
      %p112 = scmp.eq.s32.totalorder %s31, 3
      %p113 = por %p111, %p112
      %p114 = scmp.ne.s32.totalorder %s103, %s104
      %p115 = scmp.eq.s32.totalorder %s31, 0
      %p116 = por %p114, %p115
      %p117 = scmp.ne.s32.totalorder %s103, %s104
      %p118 = scmp.eq.s32.totalorder %s32, 3
      %p119 = por %p117, %p118
      %p121 = scmp.ne.s32.totalorder %s104, %s120
      %p122 = scmp.eq.s32.totalorder %s32, 0
      %p123 = por %p121, %p122
      %s124 = ssub.s32 %s33, %s45
      %p125 = scmp.eq.s32.totalorder %s124, 0
      %s127 = sadd.s32 %s126, 1
      %s128 = scalar_select %p125, %s126, %s127
      %p131 = pneg %p125
      %p132 = scmp.eq.s32.totalorder %s26, 3
      %p133 = por %p131, %p132
      %p134 = scmp.ne.s32.totalorder %s126, %s129
      %p135 = scmp.eq.s32.totalorder %s26, 0
      %p136 = por %p134, %p135
      %p137 = scmp.ne.s32.totalorder %s126, %s129
      %p138 = scmp.eq.s32.totalorder %s31, 3
      %p139 = por %p137, %p138
      %p140 = scmp.ne.s32.totalorder %s129, %s130
      %p141 = scmp.eq.s32.totalorder %s31, 0
      %p142 = por %p140, %p141
      %p143 = scmp.ne.s32.totalorder %s129, %s130
      %p144 = scmp.eq.s32.totalorder %s32, 3
      %p145 = por %p143, %p144
      %p147 = scmp.ne.s32.totalorder %s130, %s146
      %p148 = scmp.eq.s32.totalorder %s32, 0
      %p149 = por %p147, %p148
      %s150 = ssub.s32 %s33, %s45
      %s151 = ssub.s32 %s34, %s41
      %s152 = sor.u32 %s150, %s151
      %p153 = scmp.eq.s32.totalorder %s152, 0
      %s155 = sadd.s32 %s154, 1
      %s156 = scalar_select %p153, %s154, %s155
      %p159 = pneg %p153
      %p160 = scmp.eq.s32.totalorder %s26, 3
      %p161 = por %p159, %p160
      %p162 = scmp.ne.s32.totalorder %s154, %s157
      %p163 = scmp.eq.s32.totalorder %s26, 0
      %p164 = por %p162, %p163
      %p165 = scmp.ne.s32.totalorder %s154, %s157
      %p166 = scmp.eq.s32.totalorder %s31, 3
      %p167 = por %p165, %p166
      %p168 = scmp.ne.s32.totalorder %s157, %s158
      %p169 = scmp.eq.s32.totalorder %s31, 0
      %p170 = por %p168, %p169
      %p171 = scmp.ne.s32.totalorder %s157, %s158
      %p172 = scmp.eq.s32.totalorder %s32, 3
      %p173 = por %p171, %p172
      %p175 = scmp.ne.s32.totalorder %s158, %s174
      %p176 = scmp.eq.s32.totalorder %s32, 0
      %p177 = por %p175, %p176
      %s178 = ssub.s32 %s33, %s45
      %s179 = ssub.s32 %s34, %s41
      %s180 = sor.u32 %s178, %s179
      %p181 = scmp.eq.s32.totalorder %s180, 0
      %s183 = sadd.s32 %s182, 1
      %s184 = scalar_select %p181, %s182, %s183
      %p187 = pneg %p181
      %p188 = scmp.eq.s32.totalorder %s26, 3
      %p189 = por %p187, %p188
      %p190 = scmp.ne.s32.totalorder %s182, %s185
      %p191 = scmp.eq.s32.totalorder %s26, 0
      %p192 = por %p190, %p191
      %p193 = scmp.ne.s32.totalorder %s182, %s185
      %p194 = scmp.eq.s32.totalorder %s31, 3
      %p195 = por %p193, %p194
      %p196 = scmp.ne.s32.totalorder %s185, %s186
      %p197 = scmp.eq.s32.totalorder %s31, 0
      %p198 = por %p196, %p197
      %p199 = scmp.ne.s32.totalorder %s185, %s186
      %p200 = scmp.eq.s32.totalorder %s32, 3
      %p201 = por %p199, %p200
      %p203 = scmp.ne.s32.totalorder %s186, %s202
      %p204 = scmp.eq.s32.totalorder %s32, 0
      %p205 = por %p203, %p204
      %s206 = ssub.s32 %s34, %s41
      %p207 = scmp.eq.s32.totalorder %s206, 0
      %s209 = sadd.s32 %s208, 1
      %s210 = scalar_select %p207, %s208, %s209
      %p213 = pneg %p207
      %p214 = scmp.eq.s32.totalorder %s26, 3
      %p215 = por %p213, %p214
      %p216 = scmp.ne.s32.totalorder %s208, %s211
      %p217 = scmp.eq.s32.totalorder %s26, 0
      %p218 = por %p216, %p217
      %p219 = scmp.ne.s32.totalorder %s208, %s211
      %p220 = scmp.eq.s32.totalorder %s31, 3
      %p221 = por %p219, %p220
      %p222 = scmp.ne.s32.totalorder %s211, %s212
      %p223 = scmp.eq.s32.totalorder %s31, 0
      %p224 = por %p222, %p223
      %p225 = scmp.ne.s32.totalorder %s211, %s212
      %p226 = scmp.eq.s32.totalorder %s32, 3
      %p227 = por %p225, %p226
      %p229 = scmp.ne.s32.totalorder %s212, %s228
      %p230 = scmp.eq.s32.totalorder %s32, 0
      %p231 = por %p229, %p230
      %s233 = sadd.s32 %s232, 1
      %p236 = scmp.eq.s32.totalorder %s26, 3
      %p237 = scmp.ne.s32.totalorder %s232, %s234
      %p238 = scmp.eq.s32.totalorder %s26, 0
      %p239 = por %p237, %p238
      %p240 = scmp.ne.s32.totalorder %s232, %s234
      %p241 = scmp.eq.s32.totalorder %s31, 3
      %p242 = por %p240, %p241
      %p243 = scmp.ne.s32.totalorder %s234, %s235
      %p244 = scmp.eq.s32.totalorder %s31, 0
      %p245 = por %p243, %p244
      %p246 = scmp.ne.s32.totalorder %s234, %s235
      %p247 = scmp.eq.s32.totalorder %s32, 3
      %p248 = por %p246, %p247
      %p250 = scmp.ne.s32.totalorder %s235, %s249
      %p251 = scmp.eq.s32.totalorder %s32, 0
      %p252 = por %p250, %p251
      %s253 = ssub.s32 %s34, %s41
      %p254 = scmp.eq.s32.totalorder %s253, 0
      %s256 = sadd.s32 %s255, 1
      %s257 = scalar_select %p254, %s255, %s256
      %p260 = pneg %p254
      %p261 = scmp.eq.s32.totalorder %s26, 3
      %p262 = por %p260, %p261
      %p263 = scmp.ne.s32.totalorder %s255, %s258
      %p264 = scmp.eq.s32.totalorder %s26, 0
      %p265 = por %p263, %p264
      %p266 = scmp.ne.s32.totalorder %s255, %s258
      %p267 = scmp.eq.s32.totalorder %s31, 3
      %p268 = por %p266, %p267
      %p269 = scmp.ne.s32.totalorder %s258, %s259
      %p270 = scmp.eq.s32.totalorder %s31, 0
      %p271 = por %p269, %p270
      %p272 = scmp.ne.s32.totalorder %s258, %s259
      %p273 = scmp.eq.s32.totalorder %s32, 3
      %p274 = por %p272, %p273
      %p276 = scmp.ne.s32.totalorder %s259, %s275
      %p277 = scmp.eq.s32.totalorder %s32, 0
      %p278 = por %p276, %p277
      %s280 = sadd.s32 %s279, 1
      %p283 = scmp.eq.s32.totalorder %s26, 3
      %p284 = scmp.ne.s32.totalorder %s279, %s281
      %p285 = scmp.eq.s32.totalorder %s26, 0
      %p286 = por %p284, %p285
      %p287 = scmp.ne.s32.totalorder %s279, %s281
      %p288 = scmp.eq.s32.totalorder %s31, 3
      %p289 = por %p287, %p288
      %p290 = scmp.ne.s32.totalorder %s281, %s282
      %p291 = scmp.eq.s32.totalorder %s31, 0
      %p292 = por %p290, %p291
      %p293 = scmp.ne.s32.totalorder %s281, %s282
      %p294 = scmp.eq.s32.totalorder %s32, 3
      %p295 = por %p293, %p294
      %p297 = scmp.ne.s32.totalorder %s282, %s296
      %p298 = scmp.eq.s32.totalorder %s32, 0
      %p299 = por %p297, %p298
      %s300 = ssub.s32 %s33, %s45
      %s301 = ssub.s32 %s34, %s41
      %s302 = sor.u32 %s300, %s301
      %p303 = scmp.eq.s32.totalorder %s302, 0
      %s305 = sadd.s32 %s304, 1
      %s306 = scalar_select %p303, %s304, %s305
      %p309 = pneg %p303
      %p310 = scmp.eq.s32.totalorder %s26, 3
      %p311 = por %p309, %p310
      %p312 = scmp.ne.s32.totalorder %s304, %s307
      %p313 = scmp.eq.s32.totalorder %s26, 0
      %p314 = por %p312, %p313
      %p315 = scmp.ne.s32.totalorder %s304, %s307
      %p316 = scmp.eq.s32.totalorder %s31, 3
      %p317 = por %p315, %p316
      %p318 = scmp.ne.s32.totalorder %s307, %s308
      %p319 = scmp.eq.s32.totalorder %s31, 0
      %p320 = por %p318, %p319
      %p321 = scmp.ne.s32.totalorder %s307, %s308
      %p322 = scmp.eq.s32.totalorder %s32, 3
      %p323 = por %p321, %p322
      %p325 = scmp.ne.s32.totalorder %s308, %s324
      %p326 = scmp.eq.s32.totalorder %s32, 0
      %p327 = por %p325, %p326
      %p328 = scmp.le.s32.totalorder 1, %s26
      %p329 = scmp.lt.s32.totalorder %s26, 5
      %p330 = pnand %p328, %p329
      %p331 = pneg %p330
      // Predicated region
      $region9: #{tpu_custom_call.1} parent=5 // pred_check
        _
      $region10: #{tpu_custom_call.1} parent=5 // pred_check_branch
        %333 = sbr.rel (%p330) target = $region12
      $region11: #{tpu_custom_call.1} parent=5 // pred_region
        %s334 = ssub.s32 %s26, 1
        // Predicated region
        $region13: #{tpu_custom_call.1} parent=11 // pred_check
          %p335 = pneg %p245
        $region14: #{tpu_custom_call.1} parent=11 // pred_check_branch
          %337 = sbr.rel (%p335) target = $region16
        $region15: #{tpu_custom_call.1} parent=11 // pred_region
          %s339 = ssub.s32 64, 64
          %340 = vsyncadd [#allocation8], %s339
          %s342 = sshll.u32 [#allocation9], 4
          %s343 = int_to_ptr.vmem [resolvable:$true] %s342
          %345 = dma.hbm_to_vmem [thread:$0]  %s7, 64, %s343, [#allocation8]
        $region16: #{tpu_custom_call.1} parent=11 // pred_fallthru
          _
        // Predicated region
        $region17: #{tpu_custom_call.1} parent=11 // pred_check
          %p346 = pneg %p292
        $region18: #{tpu_custom_call.1} parent=11 // pred_check_branch
          %348 = sbr.rel (%p346) target = $region20
        $region19: #{tpu_custom_call.1} parent=11 // pred_region
          %s350 = ssub.s32 128, 128
          %351 = vsyncadd [#allocation11], %s350
          %s353 = sshll.u32 [#allocation10], 4
          %s354 = int_to_ptr.vmem [resolvable:$true] %s353
          %356 = dma.hbm_to_vmem [thread:$0]  %s9, 128, %s354, [#allocation11]
        $region20: #{tpu_custom_call.1} parent=11 // pred_fallthru
          _
      $region12: #{tpu_custom_call.1} parent=5 // pred_fallthru
        _
      %p357 = scmp.lt.s32.totalorder %s26, 4
      // Predicated region
      $region21: #{tpu_custom_call.1} parent=5 // pred_check
        %p358 = pneg %p357
      $region22: #{tpu_custom_call.1} parent=5 // pred_check_branch
        %360 = sbr.rel (%p358) target = $region24
      $region23: #{tpu_custom_call.1} parent=5 // pred_region
        // Predicated region
        $region25: #{tpu_custom_call.1} parent=23 // pred_check
          %p361 = pneg %p58
        $region26: #{tpu_custom_call.1} parent=23 // pred_check_branch
          %363 = sbr.rel (%p361) target = $region28
        $region27: #{tpu_custom_call.1} parent=23 // pred_region
          %p364 = scmp.lt.s32.totalorder %s33, 1
          %s365 = scalar_select %p364, %s33, 1
          %s366 = smul.addr %s365, 4
          %s367 = smul.addr %s366, 4
          %s368 = scalar_lea.vmem %s0, %s367
        $region28: #{tpu_custom_call.1} parent=23 // pred_fallthru
          _
        // Predicated region
        $region29: #{tpu_custom_call.1} parent=23 // pred_check
          %p369 = pneg %p84
        $region30: #{tpu_custom_call.1} parent=23 // pred_check_branch
          %371 = sbr.rel (%p369) target = $region32
        $region31: #{tpu_custom_call.1} parent=23 // pred_region
          %s372 = sand.u32 %s74, 1
          %s373 = scalar_lea.sflag [#allocation3], %s372
          %s374 = sand.u32 %s74, 1
          %s375 = smul.addr %s374, 16
          %s376 = scalar_lea.vmem [#allocation2], %s375
          %s378 = ssub.s32 256, 256
          %379 = vsyncadd %s373, %s378
          %s380 = smul.addr %s33, 4
          %s381 = smul.addr %s380, 64
          %s382 = scalar_lea.hbm %s1, %s381
          %s383 = sshll.u32 %s376, 4
          %s384 = int_to_ptr.vmem [resolvable:$true] %s383
          %389 = dma.hbm_to_vmem [thread:$0]  %s382, 256, %s384, %s373, 64, 64, 4
        $region32: #{tpu_custom_call.1} parent=23 // pred_fallthru
          _
        // Predicated region
        $region33: #{tpu_custom_call.1} parent=23 // pred_check
          %p390 = pneg %p110
        $region34: #{tpu_custom_call.1} parent=23 // pred_check_branch
          %392 = sbr.rel (%p390) target = $region36
        $region35: #{tpu_custom_call.1} parent=23 // pred_region
          %s393 = sand.u32 %s26, 1
          %s394 = scalar_lea.sflag [#allocation5], %s393
          %s395 = sand.u32 %s100, 1
          %s396 = smul.addr %s395, 32
          %s397 = scalar_lea.vmem [#allocation4], %s396
          %s399 = ssub.s32 512, 512
          %400 = vsyncadd %s394, %s399
          %s401 = smul.addr %s33, 4
          %s402 = smul.addr %s401, 128
          %s403 = scalar_lea.hbm %s2, %s402
          %s404 = sshll.u32 %s397, 4
          %s405 = int_to_ptr.vmem [resolvable:$true] %s404
          %410 = dma.hbm_to_vmem [thread:$0]  %s403, 512, %s405, %s394, 128, 128, 8
        $region36: #{tpu_custom_call.1} parent=23 // pred_fallthru
          _
        // Predicated region
        $region37: #{tpu_custom_call.1} parent=23 // pred_check
          %p411 = pneg %p136
        $region38: #{tpu_custom_call.1} parent=23 // pred_check_branch
          %413 = sbr.rel (%p411) target = $region40
        $region39: #{tpu_custom_call.1} parent=23 // pred_region
          %s414 = sand.u32 %s26, 1
          %s415 = scalar_lea.sflag [#allocation5], %s414
          %s416 = sand.u32 %s126, 1
          %s417 = smul.addr %s416, 32
          %s418 = scalar_lea.vmem [#allocation6], %s417
          %s420 = ssub.s32 512, 512
          %421 = vsyncadd %s415, %s420
          %s422 = smul.addr %s33, 4
          %s423 = smul.addr %s422, 128
          %s424 = scalar_lea.hbm %s3, %s423
          %s425 = sshll.u32 %s418, 4
          %s426 = int_to_ptr.vmem [resolvable:$true] %s425
          %431 = dma.hbm_to_vmem [thread:$0]  %s424, 512, %s426, %s415, 128, 128, 8
        $region40: #{tpu_custom_call.1} parent=23 // pred_fallthru
          _
        // Predicated region
        $region41: #{tpu_custom_call.1} parent=23 // pred_check
          %p432 = pneg %p164
        $region42: #{tpu_custom_call.1} parent=23 // pred_check_branch
          %434 = sbr.rel (%p432) target = $region44
        $region43: #{tpu_custom_call.1} parent=23 // pred_region
          %p435 = scmp.lt.s32.totalorder %s33, 1
          %s436 = scalar_select %p435, %s33, 1
          %p437 = scmp.lt.s32.totalorder %s34, 1
          %s438 = scalar_select %p437, %s34, 1
          %s439 = smul.addr %s436, 2
          %s440 = sadd.s32 %s438, %s439
          %s441 = smul.addr %s440, 4
          %s442 = scalar_lea.vmem %s4, %s441
        $region44: #{tpu_custom_call.1} parent=23 // pred_fallthru
          _
        // Predicated region
        $region45: #{tpu_custom_call.1} parent=23 // pred_check
          %p443 = pneg %p192
        $region46: #{tpu_custom_call.1} parent=23 // pred_check_branch
          %445 = sbr.rel (%p443) target = $region48
        $region47: #{tpu_custom_call.1} parent=23 // pred_region
          %s446 = sand.u32 %s26, 1
          %s447 = scalar_lea.sflag [#allocation8], %s446
          %s448 = sand.u32 %s182, 1
          %s449 = smul.addr %s448, 4
          %s450 = scalar_lea.vmem [#allocation7], %s449
          %s452 = ssub.s32 64, 64
          %453 = vsyncadd %s447, %s452
          %s454 = smul.addr %s33, 2
          %s455 = sadd.s32 %s34, %s454
          %s456 = smul.addr %s455, 64
          %s457 = scalar_lea.hbm %s5, %s456
          %s459 = sshll.u32 %s450, 4
          %s460 = int_to_ptr.vmem [resolvable:$true] %s459
          %462 = dma.hbm_to_vmem [thread:$0]  %s457, 64, %s460, %s447
        $region48: #{tpu_custom_call.1} parent=23 // pred_fallthru
          _
        // Predicated region
        $region49: #{tpu_custom_call.1} parent=23 // pred_check
          %p463 = pneg %p218
        $region50: #{tpu_custom_call.1} parent=23 // pred_check_branch
          %465 = sbr.rel (%p463) target = $region52
        $region51: #{tpu_custom_call.1} parent=23 // pred_region
          %p466 = scmp.lt.s32.totalorder %s34, 1
          %s467 = scalar_select %p466, %s34, 1
          %s468 = smul.addr %s467, 8
          %s469 = scalar_lea.vmem %s6, %s468
        $region52: #{tpu_custom_call.1} parent=23 // pred_fallthru
          _
        // Predicated region
        $region53: #{tpu_custom_call.1} parent=23 // pred_check
          %p470 = pneg %p265
        $region54: #{tpu_custom_call.1} parent=23 // pred_check_branch
          %472 = sbr.rel (%p470) target = $region56
        $region55: #{tpu_custom_call.1} parent=23 // pred_region
          %p473 = scmp.lt.s32.totalorder %s34, 1
          %s474 = scalar_select %p473, %s34, 1
          %s475 = smul.addr %s474, 8
          %s476 = scalar_lea.vmem %s8, %s475
        $region56: #{tpu_custom_call.1} parent=23 // pred_fallthru
          _
      $region24: #{tpu_custom_call.1} parent=5 // pred_fallthru
        _
      %p477 = scmp.le.s32.totalorder 1, %s26
      %p478 = scmp.lt.s32.totalorder %s26, 5
      %p479 = pnand %p477, %p478
      %p480 = pneg %p479
      // Predicated region
      $region57: #{tpu_custom_call.1} parent=5 // pred_check
        _
      $region58: #{tpu_custom_call.1} parent=5 // pred_check_branch
        %482 = sbr.rel (%p479) target = $region60
      $region59: #{tpu_custom_call.1} parent=5 // pred_region
        %s483 = ssub.s32 %s26, 1
        %s484 = sand.u32 %s77, 1
        %s485 = scalar_lea.sflag [#allocation3], %s484
        %s486 = sand.u32 %s77, 1
        %s487 = smul.addr %s486, 16
        %s488 = scalar_lea.vmem [#allocation2], %s487
        // Predicated region
        $region61: #{tpu_custom_call.1} parent=59 // pred_check
          %p489 = pneg %p90
        $region62: #{tpu_custom_call.1} parent=59 // pred_check_branch
          %491 = sbr.rel (%p489) target = $region64
        $region63: #{tpu_custom_call.1} parent=59 // pred_region
          %492 = dma.done %s485, 256
        $region64: #{tpu_custom_call.1} parent=59 // pred_fallthru
          _
        %s493 = sand.u32 %s31, 1
        %s494 = scalar_lea.sflag [#allocation5], %s493
        %s495 = sand.u32 %s103, 1
        %s496 = smul.addr %s495, 32
        %s497 = scalar_lea.vmem [#allocation4], %s496
        // Predicated region
        $region65: #{tpu_custom_call.1} parent=59 // pred_check
          %p498 = pneg %p116
        $region66: #{tpu_custom_call.1} parent=59 // pred_check_branch
          %500 = sbr.rel (%p498) target = $region68
        $region67: #{tpu_custom_call.1} parent=59 // pred_region
          %501 = dma.done %s494, 512
        $region68: #{tpu_custom_call.1} parent=59 // pred_fallthru
          _
        %s502 = sand.u32 %s31, 1
        %s503 = scalar_lea.sflag [#allocation5], %s502
        %s504 = sand.u32 %s129, 1
        %s505 = smul.addr %s504, 32
        %s506 = scalar_lea.vmem [#allocation6], %s505
        // Predicated region
        $region69: #{tpu_custom_call.1} parent=59 // pred_check
          %p507 = pneg %p142
        $region70: #{tpu_custom_call.1} parent=59 // pred_check_branch
          %509 = sbr.rel (%p507) target = $region72
        $region71: #{tpu_custom_call.1} parent=59 // pred_region
          %510 = dma.done %s503, 512
        $region72: #{tpu_custom_call.1} parent=59 // pred_fallthru
          _
        %s511 = sand.u32 %s31, 1
        %s512 = scalar_lea.sflag [#allocation8], %s511
        %s513 = sand.u32 %s185, 1
        %s514 = smul.addr %s513, 4
        %s515 = scalar_lea.vmem [#allocation7], %s514
        // Predicated region
        $region73: #{tpu_custom_call.1} parent=59 // pred_check
          %p516 = pneg %p198
        $region74: #{tpu_custom_call.1} parent=59 // pred_check_branch
          %518 = sbr.rel (%p516) target = $region76
        $region75: #{tpu_custom_call.1} parent=59 // pred_region
          %519 = dma.done %s512, 64
        $region76: #{tpu_custom_call.1} parent=59 // pred_fallthru
          _
        // Predicated region
        $region77: #{tpu_custom_call.1} parent=59 // pred_check
          %p520 = pneg %p245
        $region78: #{tpu_custom_call.1} parent=59 // pred_check_branch
          %522 = sbr.rel (%p520) target = $region80
        $region79: #{tpu_custom_call.1} parent=59 // pred_region
          %523 = dma.done [#allocation8], 64
        $region80: #{tpu_custom_call.1} parent=59 // pred_fallthru
          _
        // Predicated region
        $region81: #{tpu_custom_call.1} parent=59 // pred_check
          %p524 = pneg %p292
        $region82: #{tpu_custom_call.1} parent=59 // pred_check_branch
          %526 = sbr.rel (%p524) target = $region84
        $region83: #{tpu_custom_call.1} parent=59 // pred_region
          %527 = dma.done [#allocation11], 128
        $region84: #{tpu_custom_call.1} parent=59 // pred_fallthru
          _
        %p528 = scmp.lt.s32.totalorder %s35, 1
        %s529 = scalar_select %p528, %s35, 1
        %s530 = smul.addr %s529, 4
        %s531 = smul.addr %s530, 4
        %s532 = scalar_lea.vmem %s0, %s531
        %p533 = pneg %p64
        %p534 = pneg %p61
        %s535 = sand.u32 %s77, 1
        %s536 = scalar_lea.sflag [#allocation3], %s535
        %s537 = sand.u32 %s77, 1
        %s538 = smul.addr %s537, 16
        %s539 = scalar_lea.vmem [#allocation2], %s538
        %p540 = pneg %p90
        %p541 = pneg %p87
        %s542 = sand.u32 %s31, 1
        %s543 = scalar_lea.sflag [#allocation5], %s542
        %s544 = sand.u32 %s103, 1
        %s545 = smul.addr %s544, 32
        %s546 = scalar_lea.vmem [#allocation4], %s545
        %p547 = pneg %p116
        %p548 = pneg %p113
        %s549 = sand.u32 %s31, 1
        %s550 = scalar_lea.sflag [#allocation5], %s549
        %s551 = sand.u32 %s129, 1
        %s552 = smul.addr %s551, 32
        %s553 = scalar_lea.vmem [#allocation6], %s552
        %p554 = pneg %p142
        %p555 = pneg %p139
        %p556 = scmp.lt.s32.totalorder %s35, 1
        %s557 = scalar_select %p556, %s35, 1
        %p558 = scmp.lt.s32.totalorder %s36, 1
        %s559 = scalar_select %p558, %s36, 1
        %s560 = smul.addr %s557, 2
        %s561 = sadd.s32 %s559, %s560
        %s562 = smul.addr %s561, 4
        %s563 = scalar_lea.vmem %s4, %s562
        %p564 = pneg %p170
        %p565 = pneg %p167
        %s566 = sand.u32 %s31, 1
        %s567 = scalar_lea.sflag [#allocation8], %s566
        %s568 = sand.u32 %s185, 1
        %s569 = smul.addr %s568, 4
        %s570 = scalar_lea.vmem [#allocation7], %s569
        %p571 = pneg %p198
        %p572 = pneg %p195
        %p573 = scmp.lt.s32.totalorder %s36, 1
        %s574 = scalar_select %p573, %s36, 1
        %s575 = smul.addr %s574, 8
        %s576 = scalar_lea.vmem %s6, %s575
        %p577 = pneg %p224
        %p578 = pneg %p221
        %p579 = pneg %p245
        %p580 = pneg %p242
        %p581 = scmp.lt.s32.totalorder %s36, 1
        %s582 = scalar_select %p581, %s36, 1
        %s583 = smul.addr %s582, 8
        %s584 = scalar_lea.vmem %s8, %s583
        %p585 = pneg %p271
        %p586 = pneg %p268
        %p587 = pneg %p292
        %p588 = pneg %p289
        %p589 = pneg %p320
        %p590 = pneg %p317
        %s591 = sand.u32 %s307, 1
        %s592 = sand.u32 %s307, 1
        %s593 = smul.addr %s592, 16
        %s594 = scalar_lea.vmem [#allocation12], %s593
        %p595 = scmp.lt.s32.totalorder %s35, 1
        %s596 = scalar_select %p595, %s35, 1
        %s597 = smul.addr %s596, 4
        %s598 = smul.addr %s597, 4
        %s599 = scalar_lea.vmem %s0, %s598
        %p600 = scmp.lt.s32.totalorder %s35, 1
        %s601 = scalar_select %p600, %s35, 1
        %p602 = scmp.lt.s32.totalorder %s36, 1
        %s603 = scalar_select %p602, %s36, 1
        %s604 = smul.addr %s601, 2
        %s605 = sadd.s32 %s603, %s604
        %s606 = smul.addr %s605, 4
        %s607 = scalar_lea.vmem %s4, %s606
        %p608 = scmp.lt.s32.totalorder %s36, 1
        %s609 = scalar_select %p608, %s36, 1
        %s610 = smul.addr %s609, 8
        %s611 = scalar_lea.vmem %s6, %s610
        %p612 = scmp.lt.s32.totalorder %s36, 1
        %s613 = scalar_select %p612, %s36, 1
        %s614 = smul.addr %s613, 8
        %s615 = scalar_lea.vmem %s8, %s614
        %v616 = vld [vmem:[%s599] sm:$0xf]
        %v617 = vld [vmem:[%s599 + $0x4] sm:$0xf]
        %v618 = vld [vmem:[%s599 + $0x8] sm:$0xf]
        %v619 = vld [vmem:[%s599 + $0xc] sm:$0xf]
        %v620 = vld [vmem:[%s488] sm:$0xf]
        %v621 = vld [vmem:[%s488 + $0x4] sm:$0xf]
        %v622 = vld [vmem:[%s488 + $0x8] sm:$0xf]
        %v623 = vld [vmem:[%s488 + $0xc] sm:$0xf]
        %v624 = vadd.f32 %v616, %v620
        %v625 = vadd.f32 %v617, %v621
        %v626 = vadd.f32 %v618, %v622
        %v627 = vadd.f32 %v619, %v623
        %v628 = vld [vmem:[%s611] sm:$0xff]
        %v629 = vld [vmem:[#allocation9] sm:$0xf]
        %v634 = vcombine.low %v624, %v625
        %v635 = vcombine.low %v626, %v627
        %vm636 = vcmask 31744
        %v637 = vsel %vm636, %v634, 0
        %v639 = vsel %vm636, %v635, 0
        %vm641 = vcmask 1043456
        %v643 = vsel %vm641, %v629, 0
        %645 = vmatprep.subr.mxu0 0.0
        %646 = vmatpush1.msra.mxu0 0.0
        %647 = vmatprep.subr.mxu0 0.0
        %648 = vmatpush1.msra.mxu0 0.0
        %649 = vmatprep.subr.mxu0 0.0
        %650 = vmatpush1.msra.mxu0 0.0
        %651 = vmatprep.subr.mxu0 0.0
        %652 = vmatpush1.msra.mxu0 0.0
        %653 = vmatprep.subr.mxu0 0.0
        %654 = vmatpush1.msra.mxu0 0.0
        %655 = vmatprep.subr.mxu0 0.0
        %656 = vmatpush1.msra.mxu0 0.0
        %657 = vmatprep.subr.mxu0 0.0
        %658 = vmatpush1.msra.mxu0 0.0
        %659 = vmatprep.subr.mxu0 0.0
        %660 = vmatpush1.msra.mxu0 0.0
        %661 = vmatprep.subr.mxu0 0.0
        %662 = vmatpush1.msra.mxu0 0.0
        %663 = vmatprep.subr.mxu0 0.0
        %664 = vmatpush1.msra.mxu0 0.0
        %665 = vmatprep.subr.mxu0 0.0
        %666 = vmatpush1.msra.mxu0 0.0
        %667 = vmatprep.subr.mxu0 0.0
        %668 = vmatpush1.msra.mxu0 0.0
        %669 = vmatprep.subr.mxu0 0.0
        %670 = vmatpush1.msra.mxu0 0.0
        %671 = vmatprep.subr.mxu0 0.0
        %672 = vmatpush1.msra.mxu0 0.0
        %673 = vmatprep.subr.mxu0 0.0
        %674 = vmatpush1.msra.mxu0 0.0
        %675 = vmatprep.subr.mxu0 0.0
        %676 = vmatpush1.msra.mxu0 %v643
        %677 = vmatprep.subr.mxu0 0.0
        %678 = vmatpush2.msra.mxu0 0.0
        %679 = vmatprep.subr.mxu0 0.0
        %680 = vmatpush2.msra.mxu0 0.0
        %681 = vmatprep.subr.mxu0 0.0
        %682 = vmatpush2.msra.mxu0 0.0
        %683 = vmatprep.subr.mxu0 0.0
        %684 = vmatpush2.msra.mxu0 0.0
        %685 = vmatprep.subr.mxu0 0.0
        %686 = vmatpush2.msra.mxu0 0.0
        %687 = vmatprep.subr.mxu0 0.0
        %688 = vmatpush2.msra.mxu0 0.0
        %689 = vmatprep.subr.mxu0 0.0
        %690 = vmatpush2.msra.mxu0 0.0
        %691 = vmatprep.subr.mxu0 0.0
        %692 = vmatpush2.msra.mxu0 0.0
        %693 = vmatprep.subr.mxu0 0.0
        %694 = vmatpush2.msra.mxu0 0.0
        %695 = vmatprep.subr.mxu0 0.0
        %696 = vmatpush2.msra.mxu0 0.0
        %697 = vmatprep.subr.mxu0 0.0
        %698 = vmatpush2.msra.mxu0 0.0
        %699 = vmatprep.subr.mxu0 0.0
        %700 = vmatpush2.msra.mxu0 0.0
        %701 = vmatprep.subr.mxu0 0.0
        %702 = vmatpush2.msra.mxu0 0.0
        %703 = vmatprep.subr.mxu0 0.0
        %704 = vmatpush2.msra.mxu0 0.0
        %705 = vmatprep.subr.mxu0 0.0
        %706 = vmatpush2.msra.mxu0 0.0
        %707 = vmatprep.subr.mxu0 0.0
        %708 = vmatpush2.msra.mxu0 0.0
        %709 = vmatprep.mubr.f32.mxu0 0.0
        %710 = vmatmul.mubr.f32.gmra.mxu0 %v637
        %v711 = vpop.f32.mrf.mxu0
        %v712 = vadd.f32 0.0, %v711
        %v713 = vpop.f32.mrf.mxu0
        %714 = vmatprep.mubr.f32.mxu0 0.0
        %715 = vmatmul.mubr.f32.gmra.mxu0 %v639
        %v716 = vpop.f32.mrf.mxu0
        %v717 = vadd.f32 0.0, %v716
        %v718 = vpop.f32.mrf.mxu0
        %719 = vdwg.mxu0
        %v722 = vcombine.high %v712, %v712
        %v723 = vcombine.high %v717, %v717
        %v725 = vsel %vm636, %v628, 0
        %v727 = vsel %vm641, %v712, 0
        %729 = vmatprep.subr.mxu0 0.0
        %730 = vmatpush1.msra.mxu0 0.0
        %731 = vmatprep.subr.mxu0 0.0
        %732 = vmatpush1.msra.mxu0 0.0
        %733 = vmatprep.subr.mxu0 0.0
        %734 = vmatpush1.msra.mxu0 0.0
        %735 = vmatprep.subr.mxu0 0.0
        %736 = vmatpush1.msra.mxu0 0.0
        %737 = vmatprep.subr.mxu0 0.0
        %738 = vmatpush1.msra.mxu0 0.0
        %739 = vmatprep.subr.mxu0 0.0
        %740 = vmatpush1.msra.mxu0 0.0
        %741 = vmatprep.subr.mxu0 0.0
        %742 = vmatpush1.msra.mxu0 0.0
        %743 = vmatprep.subr.mxu0 0.0
        %744 = vmatpush1.msra.mxu0 0.0
        %745 = vmatprep.subr.mxu0 0.0
        %746 = vmatpush1.msra.mxu0 0.0
        %747 = vmatprep.subr.mxu0 0.0
        %748 = vmatpush1.msra.mxu0 0.0
        %749 = vmatprep.subr.mxu0 0.0
        %750 = vmatpush1.msra.mxu0 0.0
        %751 = vmatprep.subr.mxu0 0.0
        %752 = vmatpush1.msra.mxu0 0.0
        %753 = vmatprep.subr.mxu0 0.0
        %754 = vmatpush1.msra.mxu0 0.0
        %755 = vmatprep.subr.mxu0 0.0
        %756 = vmatpush1.msra.mxu0 0.0
        %757 = vmatprep.subr.mxu0 0.0
        %758 = vmatpush1.msra.mxu0 0.0
        %759 = vmatprep.subr.mxu0 0.0
        %760 = vmatpush1.msra.mxu0 %v727
        %761 = vmatprep.subr.mxu0 0.0
        %762 = vmatpush2.msra.mxu0 0.0
        %763 = vmatprep.subr.mxu0 0.0
        %764 = vmatpush2.msra.mxu0 0.0
        %765 = vmatprep.subr.mxu0 0.0
        %766 = vmatpush2.msra.mxu0 0.0
        %767 = vmatprep.subr.mxu0 0.0
        %768 = vmatpush2.msra.mxu0 0.0
        %769 = vmatprep.subr.mxu0 0.0
        %770 = vmatpush2.msra.mxu0 0.0
        %771 = vmatprep.subr.mxu0 0.0
        %772 = vmatpush2.msra.mxu0 0.0
        %773 = vmatprep.subr.mxu0 0.0
        %774 = vmatpush2.msra.mxu0 0.0
        %775 = vmatprep.subr.mxu0 0.0
        %776 = vmatpush2.msra.mxu0 0.0
        %777 = vmatprep.subr.mxu0 0.0
        %778 = vmatpush2.msra.mxu0 0.0
        %779 = vmatprep.subr.mxu0 0.0
        %780 = vmatpush2.msra.mxu0 0.0
        %781 = vmatprep.subr.mxu0 0.0
        %782 = vmatpush2.msra.mxu0 0.0
        %783 = vmatprep.subr.mxu0 0.0
        %784 = vmatpush2.msra.mxu0 0.0
        %785 = vmatprep.subr.mxu0 0.0
        %786 = vmatpush2.msra.mxu0 0.0
        %787 = vmatprep.subr.mxu0 0.0
        %788 = vmatpush2.msra.mxu0 0.0
        %789 = vmatprep.subr.mxu0 0.0
        %790 = vmatpush2.msra.mxu0 0.0
        %791 = vmatprep.subr.mxu0 0.0
        %792 = vmatpush2.msra.mxu0 0.0
        %793 = vmatprep.mubr.f32.mxu0 0.0
        %794 = vmatmul.mubr.f32.gmra.mxu0 %v725
        %v795 = vpop.f32.mrf.mxu0
        %v796 = vadd.f32 0.0, %v795
        %v797 = vpop.f32.mrf.mxu0
        %798 = vdwg.mxu0
        %v799 = vsel %vm641, %v722, 0
        %801 = vmatprep.subr.mxu0 0.0
        %802 = vmatpush1.msra.mxu0 0.0
        %803 = vmatprep.subr.mxu0 0.0
        %804 = vmatpush1.msra.mxu0 0.0
        %805 = vmatprep.subr.mxu0 0.0
        %806 = vmatpush1.msra.mxu0 0.0
        %807 = vmatprep.subr.mxu0 0.0
        %808 = vmatpush1.msra.mxu0 0.0
        %809 = vmatprep.subr.mxu0 0.0
        %810 = vmatpush1.msra.mxu0 0.0
        %811 = vmatprep.subr.mxu0 0.0
        %812 = vmatpush1.msra.mxu0 0.0
        %813 = vmatprep.subr.mxu0 0.0
        %814 = vmatpush1.msra.mxu0 0.0
        %815 = vmatprep.subr.mxu0 0.0
        %816 = vmatpush1.msra.mxu0 0.0
        %817 = vmatprep.subr.mxu0 0.0
        %818 = vmatpush1.msra.mxu0 0.0
        %819 = vmatprep.subr.mxu0 0.0
        %820 = vmatpush1.msra.mxu0 0.0
        %821 = vmatprep.subr.mxu0 0.0
        %822 = vmatpush1.msra.mxu0 0.0
        %823 = vmatprep.subr.mxu0 0.0
        %824 = vmatpush1.msra.mxu0 0.0
        %825 = vmatprep.subr.mxu0 0.0
        %826 = vmatpush1.msra.mxu0 0.0
        %827 = vmatprep.subr.mxu0 0.0
        %828 = vmatpush1.msra.mxu0 0.0
        %829 = vmatprep.subr.mxu0 0.0
        %830 = vmatpush1.msra.mxu0 0.0
        %831 = vmatprep.subr.mxu0 0.0
        %832 = vmatpush1.msra.mxu0 %v799
        %833 = vmatprep.subr.mxu0 0.0
        %834 = vmatpush2.msra.mxu0 0.0
        %835 = vmatprep.subr.mxu0 0.0
        %836 = vmatpush2.msra.mxu0 0.0
        %837 = vmatprep.subr.mxu0 0.0
        %838 = vmatpush2.msra.mxu0 0.0
        %839 = vmatprep.subr.mxu0 0.0
        %840 = vmatpush2.msra.mxu0 0.0
        %841 = vmatprep.subr.mxu0 0.0
        %842 = vmatpush2.msra.mxu0 0.0
        %843 = vmatprep.subr.mxu0 0.0
        %844 = vmatpush2.msra.mxu0 0.0
        %845 = vmatprep.subr.mxu0 0.0
        %846 = vmatpush2.msra.mxu0 0.0
        %847 = vmatprep.subr.mxu0 0.0
        %848 = vmatpush2.msra.mxu0 0.0
        %849 = vmatprep.subr.mxu0 0.0
        %850 = vmatpush2.msra.mxu0 0.0
        %851 = vmatprep.subr.mxu0 0.0
        %852 = vmatpush2.msra.mxu0 0.0
        %853 = vmatprep.subr.mxu0 0.0
        %854 = vmatpush2.msra.mxu0 0.0
        %855 = vmatprep.subr.mxu0 0.0
        %856 = vmatpush2.msra.mxu0 0.0
        %857 = vmatprep.subr.mxu0 0.0
        %858 = vmatpush2.msra.mxu0 0.0
        %859 = vmatprep.subr.mxu0 0.0
        %860 = vmatpush2.msra.mxu0 0.0
        %861 = vmatprep.subr.mxu0 0.0
        %862 = vmatpush2.msra.mxu0 0.0
        %863 = vmatprep.subr.mxu0 0.0
        %864 = vmatpush2.msra.mxu0 0.0
        %865 = vmatprep.mubr.f32.mxu0 0.0
        %866 = vmatmul.mubr.f32.gmra.mxu0 %v725
        %v867 = vpop.f32.mrf.mxu0
        %v868 = vadd.f32 0.0, %v867
        %v869 = vpop.f32.mrf.mxu0
        %870 = vdwg.mxu0
        %v871 = vsel %vm641, %v717, 0
        %873 = vmatprep.subr.mxu0 0.0
        %874 = vmatpush1.msra.mxu0 0.0
        %875 = vmatprep.subr.mxu0 0.0
        %876 = vmatpush1.msra.mxu0 0.0
        %877 = vmatprep.subr.mxu0 0.0
        %878 = vmatpush1.msra.mxu0 0.0
        %879 = vmatprep.subr.mxu0 0.0
        %880 = vmatpush1.msra.mxu0 0.0
        %881 = vmatprep.subr.mxu0 0.0
        %882 = vmatpush1.msra.mxu0 0.0
        %883 = vmatprep.subr.mxu0 0.0
        %884 = vmatpush1.msra.mxu0 0.0
        %885 = vmatprep.subr.mxu0 0.0
        %886 = vmatpush1.msra.mxu0 0.0
        %887 = vmatprep.subr.mxu0 0.0
        %888 = vmatpush1.msra.mxu0 0.0
        %889 = vmatprep.subr.mxu0 0.0
        %890 = vmatpush1.msra.mxu0 0.0
        %891 = vmatprep.subr.mxu0 0.0
        %892 = vmatpush1.msra.mxu0 0.0
        %893 = vmatprep.subr.mxu0 0.0
        %894 = vmatpush1.msra.mxu0 0.0
        %895 = vmatprep.subr.mxu0 0.0
        %896 = vmatpush1.msra.mxu0 0.0
        %897 = vmatprep.subr.mxu0 0.0
        %898 = vmatpush1.msra.mxu0 0.0
        %899 = vmatprep.subr.mxu0 0.0
        %900 = vmatpush1.msra.mxu0 0.0
        %901 = vmatprep.subr.mxu0 0.0
        %902 = vmatpush1.msra.mxu0 0.0
        %903 = vmatprep.subr.mxu0 0.0
        %904 = vmatpush1.msra.mxu0 %v871
        %905 = vmatprep.subr.mxu0 0.0
        %906 = vmatpush2.msra.mxu0 0.0
        %907 = vmatprep.subr.mxu0 0.0
        %908 = vmatpush2.msra.mxu0 0.0
        %909 = vmatprep.subr.mxu0 0.0
        %910 = vmatpush2.msra.mxu0 0.0
        %911 = vmatprep.subr.mxu0 0.0
        %912 = vmatpush2.msra.mxu0 0.0
        %913 = vmatprep.subr.mxu0 0.0
        %914 = vmatpush2.msra.mxu0 0.0
        %915 = vmatprep.subr.mxu0 0.0
        %916 = vmatpush2.msra.mxu0 0.0
        %917 = vmatprep.subr.mxu0 0.0
        %918 = vmatpush2.msra.mxu0 0.0
        %919 = vmatprep.subr.mxu0 0.0
        %920 = vmatpush2.msra.mxu0 0.0
        %921 = vmatprep.subr.mxu0 0.0
        %922 = vmatpush2.msra.mxu0 0.0
        %923 = vmatprep.subr.mxu0 0.0
        %924 = vmatpush2.msra.mxu0 0.0
        %925 = vmatprep.subr.mxu0 0.0
        %926 = vmatpush2.msra.mxu0 0.0
        %927 = vmatprep.subr.mxu0 0.0
        %928 = vmatpush2.msra.mxu0 0.0
        %929 = vmatprep.subr.mxu0 0.0
        %930 = vmatpush2.msra.mxu0 0.0
        %931 = vmatprep.subr.mxu0 0.0
        %932 = vmatpush2.msra.mxu0 0.0
        %933 = vmatprep.subr.mxu0 0.0
        %934 = vmatpush2.msra.mxu0 0.0
        %935 = vmatprep.subr.mxu0 0.0
        %936 = vmatpush2.msra.mxu0 0.0
        %937 = vmatprep.mubr.f32.mxu0 0.0
        %938 = vmatmul.mubr.f32.gmra.mxu0 %v725
        %v939 = vpop.f32.mrf.mxu0
        %v940 = vadd.f32 0.0, %v939
        %v941 = vpop.f32.mrf.mxu0
        %942 = vdwg.mxu0
        %v943 = vsel %vm641, %v723, 0
        %945 = vmatprep.subr.mxu0 0.0
        %946 = vmatpush1.msra.mxu0 0.0
        %947 = vmatprep.subr.mxu0 0.0
        %948 = vmatpush1.msra.mxu0 0.0
        %949 = vmatprep.subr.mxu0 0.0
        %950 = vmatpush1.msra.mxu0 0.0
        %951 = vmatprep.subr.mxu0 0.0
        %952 = vmatpush1.msra.mxu0 0.0
        %953 = vmatprep.subr.mxu0 0.0
        %954 = vmatpush1.msra.mxu0 0.0
        %955 = vmatprep.subr.mxu0 0.0
        %956 = vmatpush1.msra.mxu0 0.0
        %957 = vmatprep.subr.mxu0 0.0
        %958 = vmatpush1.msra.mxu0 0.0
        %959 = vmatprep.subr.mxu0 0.0
        %960 = vmatpush1.msra.mxu0 0.0
        %961 = vmatprep.subr.mxu0 0.0
        %962 = vmatpush1.msra.mxu0 0.0
        %963 = vmatprep.subr.mxu0 0.0
        %964 = vmatpush1.msra.mxu0 0.0
        %965 = vmatprep.subr.mxu0 0.0
        %966 = vmatpush1.msra.mxu0 0.0
        %967 = vmatprep.subr.mxu0 0.0
        %968 = vmatpush1.msra.mxu0 0.0
        %969 = vmatprep.subr.mxu0 0.0
        %970 = vmatpush1.msra.mxu0 0.0
        %971 = vmatprep.subr.mxu0 0.0
        %972 = vmatpush1.msra.mxu0 0.0
        %973 = vmatprep.subr.mxu0 0.0
        %974 = vmatpush1.msra.mxu0 0.0
        %975 = vmatprep.subr.mxu0 0.0
        %976 = vmatpush1.msra.mxu0 %v943
        %977 = vmatprep.subr.mxu0 0.0
        %978 = vmatpush2.msra.mxu0 0.0
        %979 = vmatprep.subr.mxu0 0.0
        %980 = vmatpush2.msra.mxu0 0.0
        %981 = vmatprep.subr.mxu0 0.0
        %982 = vmatpush2.msra.mxu0 0.0
        %983 = vmatprep.subr.mxu0 0.0
        %984 = vmatpush2.msra.mxu0 0.0
        %985 = vmatprep.subr.mxu0 0.0
        %986 = vmatpush2.msra.mxu0 0.0
        %987 = vmatprep.subr.mxu0 0.0
        %988 = vmatpush2.msra.mxu0 0.0
        %989 = vmatprep.subr.mxu0 0.0
        %990 = vmatpush2.msra.mxu0 0.0
        %991 = vmatprep.subr.mxu0 0.0
        %992 = vmatpush2.msra.mxu0 0.0
        %993 = vmatprep.subr.mxu0 0.0
        %994 = vmatpush2.msra.mxu0 0.0
        %995 = vmatprep.subr.mxu0 0.0
        %996 = vmatpush2.msra.mxu0 0.0
        %997 = vmatprep.subr.mxu0 0.0
        %998 = vmatpush2.msra.mxu0 0.0
        %999 = vmatprep.subr.mxu0 0.0
        %1000 = vmatpush2.msra.mxu0 0.0
        %1001 = vmatprep.subr.mxu0 0.0
        %1002 = vmatpush2.msra.mxu0 0.0
        %1003 = vmatprep.subr.mxu0 0.0
        %1004 = vmatpush2.msra.mxu0 0.0
        %1005 = vmatprep.subr.mxu0 0.0
        %1006 = vmatpush2.msra.mxu0 0.0
        %1007 = vmatprep.subr.mxu0 0.0
        %1008 = vmatpush2.msra.mxu0 0.0
        %1009 = vmatprep.mubr.f32.mxu0 0.0
        %1010 = vmatmul.mubr.f32.gmra.mxu0 %v725
        %v1011 = vpop.f32.mrf.mxu0
        %v1012 = vadd.f32 0.0, %v1011
        %v1013 = vpop.f32.mrf.mxu0
        %1014 = vdwg.mxu0
        %v1015 = vcombine.low %v796, %v940
        %v1016 = vcombine.high %v796, %v940
        %v1018 = vunpack.c.l.s4 1983009808
        %v1019 = vunpack.c.0.s8 %v1018
        %v1020 = vlaneseq
        %v1021 = vshrl.u32 %v1020, 7
        %v1022 = vsub.s32 %v1019, %v1021
        %v1023 = vrot.slane %v1015, %v1022
        %v1025 = vunpack.c.l.s4 1983009808
        %v1026 = vunpack.c.0.s8 %v1025
        %v1027 = vlaneseq
        %v1028 = vshrl.u32 %v1027, 7
        %v1029 = vsub.s32 %v1026, %v1028
        %v1030 = vrot.slane %v1016, %v1029
        %v1031 = vcombine.low %v868, %v1012
        %v1032 = vcombine.high %v868, %v1012
        %v1034 = vunpack.c.l.s4 1983009808
        %v1035 = vunpack.c.0.s8 %v1034
        %v1036 = vlaneseq
        %v1037 = vshrl.u32 %v1036, 7
        %v1038 = vsub.s32 %v1035, %v1037
        %v1039 = vrot.slane %v1031, %v1038
        %v1041 = vunpack.c.l.s4 1983009808
        %v1042 = vunpack.c.0.s8 %v1041
        %v1043 = vlaneseq
        %v1044 = vshrl.u32 %v1043, 7
        %v1045 = vsub.s32 %v1042, %v1044
        %v1046 = vrot.slane %v1032, %v1045
        %v1047 = vcombine.low %v1023, %v1039
        %v1048 = vcombine.high %v1023, %v1039
        %v1050 = vunpack.c.l.s4 1934713408
        %v1051 = vunpack.c.0.s8 %v1050
        %v1052 = vlaneseq
        %v1053 = vshrl.u32 %v1052, 7
        %v1054 = vsub.s32 %v1051, %v1053
        %v1055 = vrot.slane %v1047, %v1054
        %v1057 = vunpack.c.l.s4 1934713408
        %v1058 = vunpack.c.0.s8 %v1057
        %v1059 = vlaneseq
        %v1060 = vshrl.u32 %v1059, 7
        %v1061 = vsub.s32 %v1058, %v1060
        %v1062 = vrot.slane %v1048, %v1061
        %v1063 = vcombine.low %v1030, %v1046
        %v1064 = vcombine.high %v1030, %v1046
        %v1066 = vunpack.c.l.s4 1934713408
        %v1067 = vunpack.c.0.s8 %v1066
        %v1068 = vlaneseq
        %v1069 = vshrl.u32 %v1068, 7
        %v1070 = vsub.s32 %v1067, %v1069
        %v1071 = vrot.slane %v1063, %v1070
        %v1073 = vunpack.c.l.s4 1934713408
        %v1074 = vunpack.c.0.s8 %v1073
        %v1075 = vlaneseq
        %v1076 = vshrl.u32 %v1075, 7
        %v1077 = vsub.s32 %v1074, %v1076
        %v1078 = vrot.slane %v1064, %v1077
        %v1079 = vcombine.high %v1055, 0.0
        %v1080 = vcombine.high %v1062, 0.0
        %v1081 = vcombine.high %v1071, 0.0
        %v1082 = vcombine.high %v1078, 0.0
        %1084 = vrot.lane.b32.xlu0 %v1079, 16
        %v1085 = vpop.permute.xlu0 %1084
        %1088 = vrot.lane.b32.xlu0 %v1062, 32
        %v1089 = vpop.permute.xlu0 %1088
        %1092 = vrot.lane.b32.xlu0 %v1080, 48
        %v1093 = vpop.permute.xlu0 %1092
        %1096 = vrot.lane.b32.xlu0 %v1071, 64
        %v1097 = vpop.permute.xlu0 %1096
        %1100 = vrot.lane.b32.xlu0 %v1081, 80
        %v1101 = vpop.permute.xlu0 %1100
        %1104 = vrot.lane.b32.xlu0 %v1078, 96
        %v1105 = vpop.permute.xlu0 %1104
        %1108 = vrot.lane.b32.xlu0 %v1082, 112
        %v1109 = vpop.permute.xlu0 %1108
        %vm1111 = vcmask 130048
        %v1112 = vsel %vm1111, %v1055, %v1085
        %vm1113 = vcmask 261120
        %v1114 = vsel %vm1113, %v1112, %v1089
        %vm1115 = vcmask 392192
        %v1116 = vsel %vm1115, %v1114, %v1093
        %vm1117 = vcmask 523264
        %v1118 = vsel %vm1117, %v1116, %v1097
        %vm1119 = vcmask 654336
        %v1120 = vsel %vm1119, %v1118, %v1101
        %vm1121 = vcmask 785408
        %v1122 = vsel %vm1121, %v1120, %v1105
        %vm1123 = vcmask 916480
        %v1124 = vsel %vm1123, %v1122, %v1109
        %1125 = vst [vmem:[%s594] sm:$0xf] %v1124
        %v1126 = vld [vmem:[%s497] sm:$0xff]
        %v1127 = vld [vmem:[%s497 + $0x8] sm:$0xff]
        %v1128 = vld [vmem:[%s497 + $0x10] sm:$0xff]
        %v1129 = vld [vmem:[%s497 + $0x18] sm:$0xff]
        %v1130 = vld [vmem:[%s506] sm:$0xff]
        %v1131 = vld [vmem:[%s506 + $0x8] sm:$0xff]
        %v1132 = vld [vmem:[%s506 + $0x10] sm:$0xff]
        %v1133 = vld [vmem:[%s506 + $0x18] sm:$0xff]
        %v1134 = vadd.f32 %v1126, %v1130
        %v1135 = vadd.f32 %v1127, %v1131
        %v1136 = vadd.f32 %v1128, %v1132
        %v1137 = vadd.f32 %v1129, %v1133
        %v1138 = vld [vmem:[%s615] sm:$0xff]
        %v1139 = vld [vmem:[#allocation10] sm:$0xff]
        %vm1140 = vcmask 64512
        %v1142 = vsel %vm1140, %v1134, 0
        %v1145 = vsel %vm1140, %v1135, 0
        %v1148 = vsel %vm1140, %v1136, 0
        %v1151 = vsel %vm1140, %v1137, 0
        %1153 = vmatprep.subr.mxu0 0.0
        %1154 = vmatpush1.msra.mxu0 0.0
        %1155 = vmatprep.subr.mxu0 0.0
        %1156 = vmatpush1.msra.mxu0 0.0
        %1157 = vmatprep.subr.mxu0 0.0
        %1158 = vmatpush1.msra.mxu0 0.0
        %1159 = vmatprep.subr.mxu0 0.0
        %1160 = vmatpush1.msra.mxu0 0.0
        %1161 = vmatprep.subr.mxu0 0.0
        %1162 = vmatpush1.msra.mxu0 0.0
        %1163 = vmatprep.subr.mxu0 0.0
        %1164 = vmatpush1.msra.mxu0 0.0
        %1165 = vmatprep.subr.mxu0 0.0
        %1166 = vmatpush1.msra.mxu0 0.0
        %1167 = vmatprep.subr.mxu0 0.0
        %1168 = vmatpush1.msra.mxu0 0.0
        %1169 = vmatprep.subr.mxu0 0.0
        %1170 = vmatpush1.msra.mxu0 0.0
        %1171 = vmatprep.subr.mxu0 0.0
        %1172 = vmatpush1.msra.mxu0 0.0
        %1173 = vmatprep.subr.mxu0 0.0
        %1174 = vmatpush1.msra.mxu0 0.0
        %1175 = vmatprep.subr.mxu0 0.0
        %1176 = vmatpush1.msra.mxu0 0.0
        %1177 = vmatprep.subr.mxu0 0.0
        %1178 = vmatpush1.msra.mxu0 0.0
        %1179 = vmatprep.subr.mxu0 0.0
        %1180 = vmatpush1.msra.mxu0 0.0
        %1181 = vmatprep.subr.mxu0 0.0
        %1182 = vmatpush1.msra.mxu0 0.0
        %1183 = vmatprep.subr.mxu0 0.0
        %1184 = vmatpush1.msra.mxu0 %v1139
        %1185 = vmatprep.subr.mxu0 0.0
        %1186 = vmatpush2.msra.mxu0 0.0
        %1187 = vmatprep.subr.mxu0 0.0
        %1188 = vmatpush2.msra.mxu0 0.0
        %1189 = vmatprep.subr.mxu0 0.0
        %1190 = vmatpush2.msra.mxu0 0.0
        %1191 = vmatprep.subr.mxu0 0.0
        %1192 = vmatpush2.msra.mxu0 0.0
        %1193 = vmatprep.subr.mxu0 0.0
        %1194 = vmatpush2.msra.mxu0 0.0
        %1195 = vmatprep.subr.mxu0 0.0
        %1196 = vmatpush2.msra.mxu0 0.0
        %1197 = vmatprep.subr.mxu0 0.0
        %1198 = vmatpush2.msra.mxu0 0.0
        %1199 = vmatprep.subr.mxu0 0.0
        %1200 = vmatpush2.msra.mxu0 0.0
        %1201 = vmatprep.subr.mxu0 0.0
        %1202 = vmatpush2.msra.mxu0 0.0
        %1203 = vmatprep.subr.mxu0 0.0
        %1204 = vmatpush2.msra.mxu0 0.0
        %1205 = vmatprep.subr.mxu0 0.0
        %1206 = vmatpush2.msra.mxu0 0.0
        %1207 = vmatprep.subr.mxu0 0.0
        %1208 = vmatpush2.msra.mxu0 0.0
        %1209 = vmatprep.subr.mxu0 0.0
        %1210 = vmatpush2.msra.mxu0 0.0
        %1211 = vmatprep.subr.mxu0 0.0
        %1212 = vmatpush2.msra.mxu0 0.0
        %1213 = vmatprep.subr.mxu0 0.0
        %1214 = vmatpush2.msra.mxu0 0.0
        %1215 = vmatprep.subr.mxu0 0.0
        %1216 = vmatpush2.msra.mxu0 0.0
        %1217 = vmatprep.mubr.f32.mxu0 0.0
        %1218 = vmatmul.mubr.f32.gmra.mxu0 %v1142
        %v1219 = vpop.f32.mrf.mxu0
        %v1220 = vadd.f32 0.0, %v1219
        %v1221 = vpop.f32.mrf.mxu0
        %1222 = vmatprep.mubr.f32.mxu0 0.0
        %1223 = vmatmul.mubr.f32.gmra.mxu0 %v1145
        %v1224 = vpop.f32.mrf.mxu0
        %v1225 = vadd.f32 0.0, %v1224
        %v1226 = vpop.f32.mrf.mxu0
        %1227 = vmatprep.mubr.f32.mxu0 0.0
        %1228 = vmatmul.mubr.f32.gmra.mxu0 %v1148
        %v1229 = vpop.f32.mrf.mxu0
        %v1230 = vadd.f32 0.0, %v1229
        %v1231 = vpop.f32.mrf.mxu0
        %1232 = vmatprep.mubr.f32.mxu0 0.0
        %1233 = vmatmul.mubr.f32.gmra.mxu0 %v1151
        %v1234 = vpop.f32.mrf.mxu0
        %v1235 = vadd.f32 0.0, %v1234
        %v1236 = vpop.f32.mrf.mxu0
        %1237 = vdwg.mxu0
        %v1239 = vsel %vm1140, %v1138, 0
        %1241 = vmatprep.subr.mxu0 0.0
        %1242 = vmatpush1.msra.mxu0 0.0
        %1243 = vmatprep.subr.mxu0 0.0
        %1244 = vmatpush1.msra.mxu0 0.0
        %1245 = vmatprep.subr.mxu0 0.0
        %1246 = vmatpush1.msra.mxu0 0.0
        %1247 = vmatprep.subr.mxu0 0.0
        %1248 = vmatpush1.msra.mxu0 0.0
        %1249 = vmatprep.subr.mxu0 0.0
        %1250 = vmatpush1.msra.mxu0 0.0
        %1251 = vmatprep.subr.mxu0 0.0
        %1252 = vmatpush1.msra.mxu0 0.0
        %1253 = vmatprep.subr.mxu0 0.0
        %1254 = vmatpush1.msra.mxu0 0.0
        %1255 = vmatprep.subr.mxu0 0.0
        %1256 = vmatpush1.msra.mxu0 0.0
        %1257 = vmatprep.subr.mxu0 0.0
        %1258 = vmatpush1.msra.mxu0 0.0
        %1259 = vmatprep.subr.mxu0 0.0
        %1260 = vmatpush1.msra.mxu0 0.0
        %1261 = vmatprep.subr.mxu0 0.0
        %1262 = vmatpush1.msra.mxu0 0.0
        %1263 = vmatprep.subr.mxu0 0.0
        %1264 = vmatpush1.msra.mxu0 0.0
        %1265 = vmatprep.subr.mxu0 0.0
        %1266 = vmatpush1.msra.mxu0 0.0
        %1267 = vmatprep.subr.mxu0 0.0
        %1268 = vmatpush1.msra.mxu0 0.0
        %1269 = vmatprep.subr.mxu0 0.0
        %1270 = vmatpush1.msra.mxu0 0.0
        %1271 = vmatprep.subr.mxu0 0.0
        %1272 = vmatpush1.msra.mxu0 %v1220
        %1273 = vmatprep.subr.mxu0 0.0
        %1274 = vmatpush2.msra.mxu0 0.0
        %1275 = vmatprep.subr.mxu0 0.0
        %1276 = vmatpush2.msra.mxu0 0.0
        %1277 = vmatprep.subr.mxu0 0.0
        %1278 = vmatpush2.msra.mxu0 0.0
        %1279 = vmatprep.subr.mxu0 0.0
        %1280 = vmatpush2.msra.mxu0 0.0
        %1281 = vmatprep.subr.mxu0 0.0
        %1282 = vmatpush2.msra.mxu0 0.0
        %1283 = vmatprep.subr.mxu0 0.0
        %1284 = vmatpush2.msra.mxu0 0.0
        %1285 = vmatprep.subr.mxu0 0.0
        %1286 = vmatpush2.msra.mxu0 0.0
        %1287 = vmatprep.subr.mxu0 0.0
        %1288 = vmatpush2.msra.mxu0 0.0
        %1289 = vmatprep.subr.mxu0 0.0
        %1290 = vmatpush2.msra.mxu0 0.0
        %1291 = vmatprep.subr.mxu0 0.0
        %1292 = vmatpush2.msra.mxu0 0.0
        %1293 = vmatprep.subr.mxu0 0.0
        %1294 = vmatpush2.msra.mxu0 0.0
        %1295 = vmatprep.subr.mxu0 0.0
        %1296 = vmatpush2.msra.mxu0 0.0
        %1297 = vmatprep.subr.mxu0 0.0
        %1298 = vmatpush2.msra.mxu0 0.0
        %1299 = vmatprep.subr.mxu0 0.0
        %1300 = vmatpush2.msra.mxu0 0.0
        %1301 = vmatprep.subr.mxu0 0.0
        %1302 = vmatpush2.msra.mxu0 0.0
        %1303 = vmatprep.subr.mxu0 0.0
        %1304 = vmatpush2.msra.mxu0 0.0
        %1305 = vmatprep.mubr.f32.mxu0 0.0
        %1306 = vmatmul.mubr.f32.gmra.mxu0 %v1239
        %v1307 = vpop.f32.mrf.mxu0
        %v1308 = vadd.f32 0.0, %v1307
        %v1309 = vpop.f32.mrf.mxu0
        %1310 = vdwg.mxu0
        %1311 = vmatprep.subr.mxu0 0.0
        %1312 = vmatpush1.msra.mxu0 0.0
        %1313 = vmatprep.subr.mxu0 0.0
        %1314 = vmatpush1.msra.mxu0 0.0
        %1315 = vmatprep.subr.mxu0 0.0
        %1316 = vmatpush1.msra.mxu0 0.0
        %1317 = vmatprep.subr.mxu0 0.0
        %1318 = vmatpush1.msra.mxu0 0.0
        %1319 = vmatprep.subr.mxu0 0.0
        %1320 = vmatpush1.msra.mxu0 0.0
        %1321 = vmatprep.subr.mxu0 0.0
        %1322 = vmatpush1.msra.mxu0 0.0
        %1323 = vmatprep.subr.mxu0 0.0
        %1324 = vmatpush1.msra.mxu0 0.0
        %1325 = vmatprep.subr.mxu0 0.0
        %1326 = vmatpush1.msra.mxu0 0.0
        %1327 = vmatprep.subr.mxu0 0.0
        %1328 = vmatpush1.msra.mxu0 0.0
        %1329 = vmatprep.subr.mxu0 0.0
        %1330 = vmatpush1.msra.mxu0 0.0
        %1331 = vmatprep.subr.mxu0 0.0
        %1332 = vmatpush1.msra.mxu0 0.0
        %1333 = vmatprep.subr.mxu0 0.0
        %1334 = vmatpush1.msra.mxu0 0.0
        %1335 = vmatprep.subr.mxu0 0.0
        %1336 = vmatpush1.msra.mxu0 0.0
        %1337 = vmatprep.subr.mxu0 0.0
        %1338 = vmatpush1.msra.mxu0 0.0
        %1339 = vmatprep.subr.mxu0 0.0
        %1340 = vmatpush1.msra.mxu0 0.0
        %1341 = vmatprep.subr.mxu0 0.0
        %1342 = vmatpush1.msra.mxu0 %v1225
        %1343 = vmatprep.subr.mxu0 0.0
        %1344 = vmatpush2.msra.mxu0 0.0
        %1345 = vmatprep.subr.mxu0 0.0
        %1346 = vmatpush2.msra.mxu0 0.0
        %1347 = vmatprep.subr.mxu0 0.0
        %1348 = vmatpush2.msra.mxu0 0.0
        %1349 = vmatprep.subr.mxu0 0.0
        %1350 = vmatpush2.msra.mxu0 0.0
        %1351 = vmatprep.subr.mxu0 0.0
        %1352 = vmatpush2.msra.mxu0 0.0
        %1353 = vmatprep.subr.mxu0 0.0
        %1354 = vmatpush2.msra.mxu0 0.0
        %1355 = vmatprep.subr.mxu0 0.0
        %1356 = vmatpush2.msra.mxu0 0.0
        %1357 = vmatprep.subr.mxu0 0.0
        %1358 = vmatpush2.msra.mxu0 0.0
        %1359 = vmatprep.subr.mxu0 0.0
        %1360 = vmatpush2.msra.mxu0 0.0
        %1361 = vmatprep.subr.mxu0 0.0
        %1362 = vmatpush2.msra.mxu0 0.0
        %1363 = vmatprep.subr.mxu0 0.0
        %1364 = vmatpush2.msra.mxu0 0.0
        %1365 = vmatprep.subr.mxu0 0.0
        %1366 = vmatpush2.msra.mxu0 0.0
        %1367 = vmatprep.subr.mxu0 0.0
        %1368 = vmatpush2.msra.mxu0 0.0
        %1369 = vmatprep.subr.mxu0 0.0
        %1370 = vmatpush2.msra.mxu0 0.0
        %1371 = vmatprep.subr.mxu0 0.0
        %1372 = vmatpush2.msra.mxu0 0.0
        %1373 = vmatprep.subr.mxu0 0.0
        %1374 = vmatpush2.msra.mxu0 0.0
        %1375 = vmatprep.mubr.f32.mxu0 0.0
        %1376 = vmatmul.mubr.f32.gmra.mxu0 %v1239
        %v1377 = vpop.f32.mrf.mxu0
        %v1378 = vadd.f32 0.0, %v1377
        %v1379 = vpop.f32.mrf.mxu0
        %1380 = vdwg.mxu0
        %1381 = vmatprep.subr.mxu0 0.0
        %1382 = vmatpush1.msra.mxu0 0.0
        %1383 = vmatprep.subr.mxu0 0.0
        %1384 = vmatpush1.msra.mxu0 0.0
        %1385 = vmatprep.subr.mxu0 0.0
        %1386 = vmatpush1.msra.mxu0 0.0
        %1387 = vmatprep.subr.mxu0 0.0
        %1388 = vmatpush1.msra.mxu0 0.0
        %1389 = vmatprep.subr.mxu0 0.0
        %1390 = vmatpush1.msra.mxu0 0.0
        %1391 = vmatprep.subr.mxu0 0.0
        %1392 = vmatpush1.msra.mxu0 0.0
        %1393 = vmatprep.subr.mxu0 0.0
        %1394 = vmatpush1.msra.mxu0 0.0
        %1395 = vmatprep.subr.mxu0 0.0
        %1396 = vmatpush1.msra.mxu0 0.0
        %1397 = vmatprep.subr.mxu0 0.0
        %1398 = vmatpush1.msra.mxu0 0.0
        %1399 = vmatprep.subr.mxu0 0.0
        %1400 = vmatpush1.msra.mxu0 0.0
        %1401 = vmatprep.subr.mxu0 0.0
        %1402 = vmatpush1.msra.mxu0 0.0
        %1403 = vmatprep.subr.mxu0 0.0
        %1404 = vmatpush1.msra.mxu0 0.0
        %1405 = vmatprep.subr.mxu0 0.0
        %1406 = vmatpush1.msra.mxu0 0.0
        %1407 = vmatprep.subr.mxu0 0.0
        %1408 = vmatpush1.msra.mxu0 0.0
        %1409 = vmatprep.subr.mxu0 0.0
        %1410 = vmatpush1.msra.mxu0 0.0
        %1411 = vmatprep.subr.mxu0 0.0
        %1412 = vmatpush1.msra.mxu0 %v1230
        %1413 = vmatprep.subr.mxu0 0.0
        %1414 = vmatpush2.msra.mxu0 0.0
        %1415 = vmatprep.subr.mxu0 0.0
        %1416 = vmatpush2.msra.mxu0 0.0
        %1417 = vmatprep.subr.mxu0 0.0
        %1418 = vmatpush2.msra.mxu0 0.0
        %1419 = vmatprep.subr.mxu0 0.0
        %1420 = vmatpush2.msra.mxu0 0.0
        %1421 = vmatprep.subr.mxu0 0.0
        %1422 = vmatpush2.msra.mxu0 0.0
        %1423 = vmatprep.subr.mxu0 0.0
        %1424 = vmatpush2.msra.mxu0 0.0
        %1425 = vmatprep.subr.mxu0 0.0
        %1426 = vmatpush2.msra.mxu0 0.0
        %1427 = vmatprep.subr.mxu0 0.0
        %1428 = vmatpush2.msra.mxu0 0.0
        %1429 = vmatprep.subr.mxu0 0.0
        %1430 = vmatpush2.msra.mxu0 0.0
        %1431 = vmatprep.subr.mxu0 0.0
        %1432 = vmatpush2.msra.mxu0 0.0
        %1433 = vmatprep.subr.mxu0 0.0
        %1434 = vmatpush2.msra.mxu0 0.0
        %1435 = vmatprep.subr.mxu0 0.0
        %1436 = vmatpush2.msra.mxu0 0.0
        %1437 = vmatprep.subr.mxu0 0.0
        %1438 = vmatpush2.msra.mxu0 0.0
        %1439 = vmatprep.subr.mxu0 0.0
        %1440 = vmatpush2.msra.mxu0 0.0
        %1441 = vmatprep.subr.mxu0 0.0
        %1442 = vmatpush2.msra.mxu0 0.0
        %1443 = vmatprep.subr.mxu0 0.0
        %1444 = vmatpush2.msra.mxu0 0.0
        %1445 = vmatprep.mubr.f32.mxu0 0.0
        %1446 = vmatmul.mubr.f32.gmra.mxu0 %v1239
        %v1447 = vpop.f32.mrf.mxu0
        %v1448 = vadd.f32 0.0, %v1447
        %v1449 = vpop.f32.mrf.mxu0
        %1450 = vdwg.mxu0
        %1451 = vmatprep.subr.mxu0 0.0
        %1452 = vmatpush1.msra.mxu0 0.0
        %1453 = vmatprep.subr.mxu0 0.0
        %1454 = vmatpush1.msra.mxu0 0.0
        %1455 = vmatprep.subr.mxu0 0.0
        %1456 = vmatpush1.msra.mxu0 0.0
        %1457 = vmatprep.subr.mxu0 0.0
        %1458 = vmatpush1.msra.mxu0 0.0
        %1459 = vmatprep.subr.mxu0 0.0
        %1460 = vmatpush1.msra.mxu0 0.0
        %1461 = vmatprep.subr.mxu0 0.0
        %1462 = vmatpush1.msra.mxu0 0.0
        %1463 = vmatprep.subr.mxu0 0.0
        %1464 = vmatpush1.msra.mxu0 0.0
        %1465 = vmatprep.subr.mxu0 0.0
        %1466 = vmatpush1.msra.mxu0 0.0
        %1467 = vmatprep.subr.mxu0 0.0
        %1468 = vmatpush1.msra.mxu0 0.0
        %1469 = vmatprep.subr.mxu0 0.0
        %1470 = vmatpush1.msra.mxu0 0.0
        %1471 = vmatprep.subr.mxu0 0.0
        %1472 = vmatpush1.msra.mxu0 0.0
        %1473 = vmatprep.subr.mxu0 0.0
        %1474 = vmatpush1.msra.mxu0 0.0
        %1475 = vmatprep.subr.mxu0 0.0
        %1476 = vmatpush1.msra.mxu0 0.0
        %1477 = vmatprep.subr.mxu0 0.0
        %1478 = vmatpush1.msra.mxu0 0.0
        %1479 = vmatprep.subr.mxu0 0.0
        %1480 = vmatpush1.msra.mxu0 0.0
        %1481 = vmatprep.subr.mxu0 0.0
        %1482 = vmatpush1.msra.mxu0 %v1235
        %1483 = vmatprep.subr.mxu0 0.0
        %1484 = vmatpush2.msra.mxu0 0.0
        %1485 = vmatprep.subr.mxu0 0.0
        %1486 = vmatpush2.msra.mxu0 0.0
        %1487 = vmatprep.subr.mxu0 0.0
        %1488 = vmatpush2.msra.mxu0 0.0
        %1489 = vmatprep.subr.mxu0 0.0
        %1490 = vmatpush2.msra.mxu0 0.0
        %1491 = vmatprep.subr.mxu0 0.0
        %1492 = vmatpush2.msra.mxu0 0.0
        %1493 = vmatprep.subr.mxu0 0.0
        %1494 = vmatpush2.msra.mxu0 0.0
        %1495 = vmatprep.subr.mxu0 0.0
        %1496 = vmatpush2.msra.mxu0 0.0
        %1497 = vmatprep.subr.mxu0 0.0
        %1498 = vmatpush2.msra.mxu0 0.0
        %1499 = vmatprep.subr.mxu0 0.0
        %1500 = vmatpush2.msra.mxu0 0.0
        %1501 = vmatprep.subr.mxu0 0.0
        %1502 = vmatpush2.msra.mxu0 0.0
        %1503 = vmatprep.subr.mxu0 0.0
        %1504 = vmatpush2.msra.mxu0 0.0
        %1505 = vmatprep.subr.mxu0 0.0
        %1506 = vmatpush2.msra.mxu0 0.0
        %1507 = vmatprep.subr.mxu0 0.0
        %1508 = vmatpush2.msra.mxu0 0.0
        %1509 = vmatprep.subr.mxu0 0.0
        %1510 = vmatpush2.msra.mxu0 0.0
        %1511 = vmatprep.subr.mxu0 0.0
        %1512 = vmatpush2.msra.mxu0 0.0
        %1513 = vmatprep.subr.mxu0 0.0
        %1514 = vmatpush2.msra.mxu0 0.0
        %1515 = vmatprep.mubr.f32.mxu0 0.0
        %1516 = vmatmul.mubr.f32.gmra.mxu0 %v1239
        %v1517 = vpop.f32.mrf.mxu0
        %v1518 = vadd.f32 0.0, %v1517
        %v1519 = vpop.f32.mrf.mxu0
        %1520 = vdwg.mxu0
        %v1521 = vcombine.low %v1308, %v1448
        %v1522 = vcombine.high %v1308, %v1448
        %v1524 = vunpack.c.l.s4 1983009808
        %v1525 = vunpack.c.0.s8 %v1524
        %v1526 = vlaneseq
        %v1527 = vshrl.u32 %v1526, 7
        %v1528 = vsub.s32 %v1525, %v1527
        %v1529 = vrot.slane %v1521, %v1528
        %v1531 = vunpack.c.l.s4 1983009808
        %v1532 = vunpack.c.0.s8 %v1531
        %v1533 = vlaneseq
        %v1534 = vshrl.u32 %v1533, 7
        %v1535 = vsub.s32 %v1532, %v1534
        %v1536 = vrot.slane %v1522, %v1535
        %v1537 = vcombine.low %v1378, %v1518
        %v1538 = vcombine.high %v1378, %v1518
        %v1540 = vunpack.c.l.s4 1983009808
        %v1541 = vunpack.c.0.s8 %v1540
        %v1542 = vlaneseq
        %v1543 = vshrl.u32 %v1542, 7
        %v1544 = vsub.s32 %v1541, %v1543
        %v1545 = vrot.slane %v1537, %v1544
        %v1547 = vunpack.c.l.s4 1983009808
        %v1548 = vunpack.c.0.s8 %v1547
        %v1549 = vlaneseq
        %v1550 = vshrl.u32 %v1549, 7
        %v1551 = vsub.s32 %v1548, %v1550
        %v1552 = vrot.slane %v1538, %v1551
        %v1553 = vcombine.low %v1529, %v1545
        %v1554 = vcombine.high %v1529, %v1545
        %v1556 = vunpack.c.l.s4 1934713408
        %v1557 = vunpack.c.0.s8 %v1556
        %v1558 = vlaneseq
        %v1559 = vshrl.u32 %v1558, 7
        %v1560 = vsub.s32 %v1557, %v1559
        %v1561 = vrot.slane %v1553, %v1560
        %v1563 = vunpack.c.l.s4 1934713408
        %v1564 = vunpack.c.0.s8 %v1563
        %v1565 = vlaneseq
        %v1566 = vshrl.u32 %v1565, 7
        %v1567 = vsub.s32 %v1564, %v1566
        %v1568 = vrot.slane %v1554, %v1567
        %v1569 = vcombine.low %v1536, %v1552
        %v1570 = vcombine.high %v1536, %v1552
        %v1572 = vunpack.c.l.s4 1934713408
        %v1573 = vunpack.c.0.s8 %v1572
        %v1574 = vlaneseq
        %v1575 = vshrl.u32 %v1574, 7
        %v1576 = vsub.s32 %v1573, %v1575
        %v1577 = vrot.slane %v1569, %v1576
        %v1579 = vunpack.c.l.s4 1934713408
        %v1580 = vunpack.c.0.s8 %v1579
        %v1581 = vlaneseq
        %v1582 = vshrl.u32 %v1581, 7
        %v1583 = vsub.s32 %v1580, %v1582
        %v1584 = vrot.slane %v1570, %v1583
        %v1585 = vcombine.high %v1561, 0.0
        %v1586 = vcombine.high %v1568, 0.0
        %v1587 = vcombine.high %v1577, 0.0
        %v1588 = vcombine.high %v1584, 0.0
        %1590 = vrot.lane.b32.xlu0 %v1585, 16
        %v1591 = vpop.permute.xlu0 %1590
        %1594 = vrot.lane.b32.xlu0 %v1568, 32
        %v1595 = vpop.permute.xlu0 %1594
        %1598 = vrot.lane.b32.xlu0 %v1586, 48
        %v1599 = vpop.permute.xlu0 %1598
        %1602 = vrot.lane.b32.xlu0 %v1577, 64
        %v1603 = vpop.permute.xlu0 %1602
        %1606 = vrot.lane.b32.xlu0 %v1587, 80
        %v1607 = vpop.permute.xlu0 %1606
        %1610 = vrot.lane.b32.xlu0 %v1584, 96
        %v1611 = vpop.permute.xlu0 %1610
        %1614 = vrot.lane.b32.xlu0 %v1588, 112
        %v1615 = vpop.permute.xlu0 %1614
        %v1617 = vsel %vm1111, %v1561, %v1591
        %v1618 = vsel %vm1113, %v1617, %v1595
        %v1619 = vsel %vm1115, %v1618, %v1599
        %v1620 = vsel %vm1117, %v1619, %v1603
        %v1621 = vsel %vm1119, %v1620, %v1607
        %v1622 = vsel %vm1121, %v1621, %v1611
        %v1623 = vsel %vm1123, %v1622, %v1615
        %1624 = vst [vmem:[%s594 + $0x4] sm:$0xf] %v1623
        %v1625 = vld [vmem:[%s607] sm:$0xf]
        %v1626 = vld [vmem:[%s515] sm:$0xf]
        %v1627 = vadd.f32 %v1625, %v1626
        %1628 = vst [vmem:[%s594 + $0x8] sm:$0xf] %v1627
        %s1629 = sand.u32 %s307, 1
        %s1630 = sand.u32 %s307, 1
        %s1631 = smul.addr %s1630, 16
        %s1632 = scalar_lea.vmem [#allocation12], %s1631
        // Predicated region
        $region85: #{tpu_custom_call.1} parent=59 // pred_check
          %p1633 = pneg %p317
        $region86: #{tpu_custom_call.1} parent=59 // pred_check_branch
          %1635 = sbr.rel (%p1633) target = $region88
        $region87: #{tpu_custom_call.1} parent=59 // pred_region
          %s1636 = smul.addr %s35, 4
          %s1637 = sadd.s32 %s36, %s1636
          %s1638 = smul.addr %s1637, 8
          %s1639 = scalar_lea.vmem %s10, %s1638
          // Predicated region
          $region89: #{tpu_custom_call.1} parent=87 // pred_check
            _
          $region90: #{tpu_custom_call.1} parent=87 // pred_check_branch
            %1641 = sbr.rel (0) target = $region92
          $region91: #{tpu_custom_call.1} parent=87 // pred_region
            // Predicated region
            $region93: #{tpu_custom_call.1} parent=91 // pred_check
              _
            $region94: #{tpu_custom_call.1} parent=91 // pred_check_branch
              %1643 = sbr.rel (0) target = $region96
            $region95: #{tpu_custom_call.1} parent=91 // pred_region
              // Predicated region
              $region108: #{tpu_custom_call.1} parent=95 // pred_check
                _
              $region109: #{tpu_custom_call.1} parent=95 // pred_check_branch
                %1661 = sbr.rel (0) target = $region111
              $region110: #{tpu_custom_call.1} parent=95 // pred_region
                loop: start=0, step=1, limit=1
                $region112: #{tpu_custom_call.1} parent=110 // loop_pre_header
                  _
                $region113: #{tpu_custom_call.1} parent=110 // loop_header
                  %s1663 = sphi 0, %s1667
                  %p1664 = scmp.ge.s32.totalorder %s1663, 1
                  %s1668 = sphi %s1632, %s1632
                  %s1669 = sphi %s1639, %s1639
                $region114: #{tpu_custom_call.1} parent=110 // loop_header_branch
                  %1666 = sbr.rel (%p1664) target = $region118
                $region115: #{tpu_custom_call.1} parent=110 // loop_body
                  %v1670 = vld [vmem:[%s1668] sm:$0xff]
                  %1671 = vst [vmem:[%s1669] sm:$0xff] %v1670
                  %v1672 = vld [vmem:[%s1668 + $0x8] sm:$0xff]
                  %1673 = vst [vmem:[%s1669 + $0x10] sm:$0xff] %v1672
                $region116: #{tpu_custom_call.1} parent=110 // loop_footer
                  %s1667 = sadd.s32 1, %s1663
                $region117: #{tpu_custom_call.1} parent=110 // loop_footer_branch
                  %1662 = sbr.rel target = $region113
                $region118: #{tpu_custom_call.1} parent=110 // loop_exit
                  _
              $region111: #{tpu_custom_call.1} parent=95 // pred_fallthru
                _
              // Predicated region
              $region119: #{tpu_custom_call.1} parent=95 // pred_check
                _
              $region120: #{tpu_custom_call.1} parent=95 // pred_check_branch
                %1675 = sbr.rel target = $region122
              $region121: #{tpu_custom_call.1} parent=95 // pred_region
                _
              $region122: #{tpu_custom_call.1} parent=95 // pred_fallthru
                _
            $region96: #{tpu_custom_call.1} parent=91 // pred_fallthru
              _
            // Predicated region
            $region97: #{tpu_custom_call.1} parent=91 // pred_check
              _
            $region98: #{tpu_custom_call.1} parent=91 // pred_check_branch
              %1645 = sbr.rel target = $region100
            $region99: #{tpu_custom_call.1} parent=91 // pred_region
              %s1647 = ssub.s32 256, 1
              loop: start=0, step=1, limit=1
              $region101: #{tpu_custom_call.1} parent=99 // loop_pre_header
                _
              $region102: #{tpu_custom_call.1} parent=99 // loop_header
                %s1649 = sphi 0, %s1653
                %p1650 = scmp.ge.s32.totalorder %s1649, 1
                %s1654 = sphi %s1632, %s1632
                %s1655 = sphi %s1639, %s1639
              $region103: #{tpu_custom_call.1} parent=99 // loop_header_branch
                %1652 = sbr.rel (%p1650) target = $region107
              $region104: #{tpu_custom_call.1} parent=99 // loop_body
                %v1656 = vld [vmem:[%s1654] sm:%s1647]
                %1657 = vst [vmem:[%s1655] sm:%s1647] %v1656
                %v1658 = vld [vmem:[%s1654 + $0x8] sm:%s1647]
                %1659 = vst [vmem:[%s1655 + $0x10] sm:%s1647] %v1658
              $region105: #{tpu_custom_call.1} parent=99 // loop_footer
                %s1653 = sadd.s32 1, %s1649
              $region106: #{tpu_custom_call.1} parent=99 // loop_footer_branch
                %1648 = sbr.rel target = $region102
              $region107: #{tpu_custom_call.1} parent=99 // loop_exit
                _
            $region100: #{tpu_custom_call.1} parent=91 // pred_fallthru
              _
          $region92: #{tpu_custom_call.1} parent=87 // pred_fallthru
            _
          %1676 = vnop
        $region88: #{tpu_custom_call.1} parent=59 // pred_fallthru
          _
      $region60: #{tpu_custom_call.1} parent=5 // pred_fallthru
        _
      %p1677 = scmp.le.s32.totalorder 2, %s26
      // Predicated region
      $region123: #{tpu_custom_call.1} parent=5 // pred_check
        %p1678 = pneg %p1677
      $region124: #{tpu_custom_call.1} parent=5 // pred_check_branch
        %1680 = sbr.rel (%p1678) target = $region126
      $region125: #{tpu_custom_call.1} parent=5 // pred_region
        %s1681 = ssub.s32 %s26, 2
        // Predicated region
        $region127: #{tpu_custom_call.1} parent=125 // pred_check
          %p1682 = pneg %p323
        $region128: #{tpu_custom_call.1} parent=125 // pred_check_branch
          %1684 = sbr.rel (%p1682) target = $region130
        $region129: #{tpu_custom_call.1} parent=125 // pred_region
          %s1685 = sand.u32 %s308, 1
          %s1686 = sand.u32 %s308, 1
          %s1687 = smul.addr %s1686, 16
          %s1688 = scalar_lea.vmem [#allocation12], %s1687
        $region130: #{tpu_custom_call.1} parent=125 // pred_fallthru
          _
      $region126: #{tpu_custom_call.1} parent=5 // pred_fallthru
        _
    $region6: #{tpu_custom_call.1} parent=1 // loop_footer
      %s30 = sadd.s32 1, %s26
    $region7: #{tpu_custom_call.1} parent=1 // loop_footer_branch
      %25 = sbr.rel target = $region3
    $region8: #{tpu_custom_call.1} parent=1 // loop_exit
      _
    %1689 = vsyncpa [#allocation3], 1
    %s1690 = scalar_lea.sflag [#allocation3], 1
    %1691 = vsyncpa %s1690, 1
    %1692 = vsyncpa [#allocation5], 1
    %s1693 = scalar_lea.sflag [#allocation5], 1
    %1694 = vsyncpa %s1693, 1
    %1695 = vsyncpa [#allocation8], 1
    %s1696 = scalar_lea.sflag [#allocation8], 1
    %1697 = vsyncpa %s1696, 1
    %1698 = vsyncpa [#allocation11], 1

</llo_original>
